<compile_context>
chip_gen: v6e
topology: v6e:2x2x1
jax: 0.10.0
libtpu: 0.0.40
codegen_flags: <defaults>
</compile_context>

<pallas_src>
import functools
import numpy as np

import jax
import jax.numpy as jnp
from jax.experimental import pallas as pl
from jax.experimental.pallas import tpu as pltpu


# ------------------------- fused forward Pallas kernel ----------------------

def _make_fused_kernel(has_history, E, Vm):
    """Build the fused post-embedding forward kernel.

    Operand order (all VMEM, full-array blocks):
      seqs      (T, 4E)        packed [diag|pro|age|hr] mean-embedding sequence
      wih_bd    (4E, 3*4H)     block-diagonal, gate-major [r|z|n] input weights
      whh_bd    (4H, 3*4H)     block-diagonal, gate-major recurrent weights
      gru_bias  (2, 3*4H)      row0 = b_ih, row1 = b_hh (same column layout)
      wq        (4H, E)        query Linear (input is the packed hidden state)
      bias_pack (4, 128)       row0[:E]=bq, row1[:2E]=bo1, row2[:Vm]=bo2, row3[:Vm]=bf
      drug_mem  (Vm, E)        precomputed GCN node embeddings
      wo1       (3E, 2E)
      wo2       (2E, Vm)
      cf_mean   (1, E)         mean diagnosis embedding (collaborative filtering)
      med_emb   (Vm, E)
      wf        (2Vm, Vm)
      [hist     (T-1, Vm)]     only when has_history
    """

    def kernel(seqs_ref, wih_ref, whh_ref, grub_ref, wq_ref, bias_ref,
               dm_ref, wo1_ref, wo2_ref, cf_ref, med_ref, wf_ref, *rest):
        if has_history:
            hist_ref, out_ref = rest
        else:
            (out_ref,) = rest
            hist_ref = None

        f32 = jnp.float32
        T = seqs_ref.shape[0]
        G = whh_ref.shape[0]          # 4H = packed gate-group width (256)

        # ---- 4 GRU encoders batched via block-diagonal weights --------------
        # PyTorch gate order (r, z, n); h0 = 0; b_hn stays inside r * (...).
        x = seqs_ref[...]                                              # (T, 4E)
        gi_all = (jnp.dot(x, wih_ref[...], preferred_element_type=f32)
                  + grub_ref[0:1, :])                                  # (T, 3*4H)
        whh = whh_ref[...]
        bhh = grub_ref[1:2, :]

        h = jnp.zeros((1, G), f32)
        rows = []
        for t in range(T):            # T is a trace-time constant -> unrolled
            gi = gi_all[t:t + 1, :]
            gh = jnp.dot(h, whh, preferred_element_type=f32) + bhh     # (1, 3*4H)
            r = jax.nn.sigmoid(gi[:, :G] + gh[:, :G])
            z = jax.nn.sigmoid(gi[:, G:2 * G] + gh[:, G:2 * G])
            n = jnp.tanh(gi[:, 2 * G:] + r * gh[:, 2 * G:])
            h = (1.0 - z) * n + z * h
            rows.append(h)

        # packed hidden state is already [o1 | o2 | o3 | o4] per time step
        hs = jnp.concatenate(rows, axis=0) if T > 1 else rows[0]       # (T, 4H)

        # ---- query head: ReLU -> Linear(8E -> E) -----------------------------
        bq = bias_ref[0:1, :E]
        queries = (jnp.dot(jnp.maximum(hs, 0.0), wq_ref[...],
                           preferred_element_type=f32) + bq)           # (T, E)
        query = queries[T - 1:T, :]                                    # (1, E)

        def softmax_row(s):
            m = jnp.max(s, axis=-1, keepdims=True)
            e = jnp.exp(s - m)
            return e / jnp.sum(e, axis=-1, keepdims=True)

        # ---- memory read from the (precomputed) drug memory ------------------
        dm = dm_ref[...]                                               # (Vm, E)
        s1 = jax.lax.dot_general(query, dm, (((1,), (1,)), ((), ())),
                                 preferred_element_type=f32)           # (1, Vm)
        fact1 = jnp.dot(softmax_row(s1), dm, preferred_element_type=f32)  # (1, E)

        if has_history:
            history_keys = queries[:T - 1, :]                          # (T-1, E)
            s2 = jax.lax.dot_general(query, history_keys,
                                     (((1,), (1,)), ((), ())),
                                     preferred_element_type=f32)       # (1, T-1)
            wv = jnp.dot(softmax_row(s2), hist_ref[...],
                         preferred_element_type=f32)                   # (1, Vm)
            fact2 = jnp.dot(wv, dm, preferred_element_type=f32)        # (1, E)
        else:
            fact2 = fact1

        # ---- output MLP via split-weight sums (no sub-128-lane concats) -----
        # ReLU(concat([q, f1, f2])) @ wo1 == sum_k ReLU(piece_k) @ wo1[rows_k]
        wo1 = wo1_ref[...]
        bo1 = bias_ref[1:2, :2 * E]
        h_mlp = (jnp.dot(jnp.maximum(query, 0.0), wo1[0:E, :],
                         preferred_element_type=f32)
                 + jnp.dot(jnp.maximum(fact1, 0.0), wo1[E:2 * E, :],
                           preferred_element_type=f32)
                 + jnp.dot(jnp.maximum(fact2, 0.0), wo1[2 * E:3 * E, :],
                           preferred_element_type=f32)
                 + bo1)
        h_mlp = jnp.maximum(h_mlp, 0.0)
        bo2 = bias_ref[2:3, :Vm]
        output_1 = (jnp.dot(h_mlp, wo2_ref[...], preferred_element_type=f32)
                    + bo2)                                             # (1, Vm)

        # ---- collaborative filtering: mean is linear -> (1,E) x (E,Vm) -------
        output_2 = jax.lax.dot_general(cf_ref[...], med_ref[...],
                                       (((1,), (1,)), ((), ())),
                                       preferred_element_type=f32)     # (1, Vm)

        # ---- final head: ReLU -> Linear(2Vm -> Vm), split-weight sum ---------
        wf = wf_ref[...]
        bf = bias_ref[3:4, :Vm]
        out_ref[...] = (jnp.dot(jnp.maximum(output_1, 0.0), wf[0:Vm, :],
                                preferred_element_type=f32)
                        + jnp.dot(jnp.maximum(output_2, 0.0), wf[Vm:2 * Vm, :],
                                  preferred_element_type=f32)
                        + bf)

    return kernel


def _fused_forward(operands, E, Vm, has_history):
    kernel = _make_fused_kernel(has_history, E, Vm)
    return pl.pallas_call(
        kernel,
        out_shape=jax.ShapeDtypeStruct((1, Vm), jnp.float32),
        in_specs=[pl.BlockSpec(memory_space=pltpu.MemorySpace.VMEM)] * len(operands),
        out_specs=pl.BlockSpec(memory_space=pltpu.MemorySpace.VMEM),
    )(*operands)


# -------------------------- parameters & packing ----------------------------

def init_params(key, vocab_size, emb_dim):
    E = emb_dim
    Vd, Vp, Va, Vh, Vm = vocab_size
    keys = iter(jax.random.split(key, 32))

    def u(shape, scale):
        return jax.random.uniform(next(keys), shape, jnp.float32, -scale, scale)

    p = {
        'diag_emb': u((Vd, E), 0.1),
        'pro_emb':  u((Vp, E), 0.1),
        'age_emb':  u((Va, E), 0.1),
        'hr_emb':   u((Vh, E), 0.1),
        'med_emb':  u((Vm, E), 0.1),
    }
    H = 2 * E
    s = 1.0 / np.sqrt(H)
    p['gru_wih'] = u((4, E, 3 * H), s)     # per encoder, columns = [r | z | n]
    p['gru_whh'] = u((4, H, 3 * H), s)
    p['gru_bih'] = u((4, 3 * H), s)
    p['gru_bhh'] = u((4, 3 * H), s)

    s = 1.0 / np.sqrt(8 * E)
    p['wq'] = u((8 * E, E), s); p['bq'] = u((E,), s)

    s = 1.0 / np.sqrt(E)
    p['gcn_w1'] = u((Vm, E), s); p['gcn_b1'] = u((E,), s)
    p['gcn_w2'] = u((E, E), s);  p['gcn_b2'] = u((E,), s)

    s = 1.0 / np.sqrt(3 * E)
    p['wo1'] = u((3 * E, 2 * E), s); p['bo1'] = u((2 * E,), s)
    s = 1.0 / np.sqrt(2 * E)
    p['wo2'] = u((2 * E, Vm), s);    p['bo2'] = u((Vm,), s)

    s = 1.0 / np.sqrt(2 * Vm)
    p['wf'] = u((2 * Vm, Vm), s);    p['bf'] = u((Vm,), s)
    return p


def normalize_adj(adj):
    """Row-normalize(adj + I), exactly like GCN.normalize in the PyTorch module."""
    adj = adj + np.eye(adj.shape[0], dtype=adj.dtype)
    rowsum = adj.sum(1)
    with np.errstate(divide='ignore'):
        r_inv = np.power(rowsum, -1.0)
    r_inv[np.isinf(r_inv)] = 0.0
    return (np.diagflat(r_inv) @ adj).astype(np.float32)


def prepare_model(params, ehr_adj, vocab_size, emb_dim):
    """One-time per-parameter-load packing + hoisted (input-independent) GCN."""
    E = emb_dim
    H = 2 * E
    Vm = vocab_size[-1]
    K = 4
    H4 = K * H

    # block-diagonal, gate-major GRU weights: columns [ r(4H) | z(4H) | n(4H) ]
    wih = np.asarray(params['gru_wih'])
    whh = np.asarray(params['gru_whh'])
    bih = np.asarray(params['gru_bih'])
    bhh = np.asarray(params['gru_bhh'])
    wih_bd = np.zeros((K * E, 3 * H4), np.float32)
    whh_bd = np.zeros((K * H, 3 * H4), np.float32)
    grub = np.zeros((2, 3 * H4), np.float32)
    for k in range(K):
        for g in range(3):
            col = g * H4 + k * H
            wih_bd[k * E:(k + 1) * E, col:col + H] = wih[k, :, g * H:(g + 1) * H]
            whh_bd[k * H:(k + 1) * H, col:col + H] = whh[k, :, g * H:(g + 1) * H]
            grub[0, col:col + H] = bih[k, g * H:(g + 1) * H]
            grub[1, col:col + H] = bhh[k, g * H:(g + 1) * H]

    # small head biases packed into one lane-padded operand
    bias_pack = np.zeros((4, 128), np.float32)
    bias_pack[0, :E] = np.asarray(params['bq'])
    bias_pack[1, :2 * E] = np.asarray(params['bo1'])
    bias_pack[2, :Vm] = np.asarray(params['bo2'])
    bias_pack[3, :Vm] = np.asarray(params['bf'])

    # drug memory: depends only on adjacency + GCN weights (identity input),
    # so compute once here instead of inside every kernel call.
    adj_norm = jnp.asarray(normalize_adj(ehr_adj))
    h1 = jnp.maximum(jnp.dot(adj_norm, params['gcn_w1']) + params['gcn_b1'], 0.0)
    drug_memory = (jnp.dot(adj_norm, jnp.dot(h1, params['gcn_w2']))
                   + params['gcn_b2'])                                  # (Vm, E)

    return {
        'diag_emb': params['diag_emb'], 'pro_emb': params['pro_emb'],
        'age_emb': params['age_emb'], 'hr_emb': params['hr_emb'],
        'med_emb': params['med_emb'],
        'gru_wih_bd': jnp.asarray(wih_bd),
        'gru_whh_bd': jnp.asarray(whh_bd),
        'gru_bias': jnp.asarray(grub),
        'wq': params['wq'],
        'bias_pack': jnp.asarray(bias_pack),
        'drug_memory': drug_memory,
        'wo1': params['wo1'], 'wo2': params['wo2'], 'wf': params['wf'],
    }


def prepare_admissions(input_adms, age, heart_rate, vocab_med):
    """Pad ragged per-admission code lists to bucketed device arrays + masks,
    so model_forward only retraces per (T, bucket) shape, not per patient."""
    def bucket(n):                       # round up to a multiple of 4
        return max(4, ((n + 3) // 4) * 4)

    T = len(input_adms)
    dmax = bucket(max(len(adm[0]) for adm in input_adms))
    pmax = bucket(max(len(adm[1]) for adm in input_adms))
    diag_idx = np.zeros((T, dmax), np.int32)
    diag_mask = np.zeros((T, dmax), np.float32)
    pro_idx = np.zeros((T, pmax), np.int32)
    pro_mask = np.zeros((T, pmax), np.float32)
    for t, adm in enumerate(input_adms):
        diag_idx[t, :len(adm[0])] = adm[0]
        diag_mask[t, :len(adm[0])] = 1.0
        pro_idx[t, :len(adm[1])] = adm[1]
        pro_mask[t, :len(adm[1])] = 1.0

    if T > 1:
        hist = np.zeros((T - 1, vocab_med), np.float32)
        for t, adm in enumerate(input_adms[:-1]):
            hist[t, list(adm[2])] = 1.0
        hist = jnp.asarray(hist)
    else:
        hist = None

    # matches the reference: only heartRate[0] and heartRate[1] are used
    hr_idx = jnp.asarray(np.asarray(heart_rate[:2], np.int32))
    return (jnp.asarray(diag_idx), jnp.asarray(diag_mask),
            jnp.asarray(pro_idx), jnp.asarray(pro_mask),
            jnp.asarray(np.int32(age)), hr_idx, hist)


# ------------------------------- forward ------------------------------------

@jax.jit
def model_forward(state, diag_idx, diag_mask, pro_idx, pro_mask, age, hr_idx, hist):
    E = state['diag_emb'].shape[1]
    Vm = state['med_emb'].shape[0]
    T = diag_idx.shape[0]

    def masked_mean(table, idx, mask):
        emb = table[idx]                                            # (T, L, E)
        return (jnp.sum(emb * mask[..., None], axis=1)
                / jnp.sum(mask, axis=1, keepdims=True))

    # per-admission mean embeddings (dropout = identity in eval)
    diag_seq = masked_mean(state['diag_emb'], diag_idx, diag_mask)  # (T, E)
    pro_seq = masked_mean(state['pro_emb'], pro_idx, pro_mask)      # (T, E)
    age_row = state['age_emb'][age]                                 # (E,)
    hr_row = jnp.mean(state['hr_emb'][hr_idx], axis=0)              # (E,)
    age_seq = jnp.broadcast_to(age_row[None, :], (T, E))
    hr_seq = jnp.broadcast_to(hr_row[None, :], (T, E))
    seqs = jnp.concatenate([diag_seq, pro_seq, age_seq, hr_seq], axis=-1)  # (T, 4E)

    # collaborative filtering: mean over the full (multiset) diagnosis list;
    # mean is linear, so take it here and contract against med_emb in-kernel.
    cf_mean = (jnp.sum(state['diag_emb'][diag_idx] * diag_mask[..., None],
                       axis=(0, 1)) / jnp.sum(diag_mask)).reshape(1, E)

    has_history = hist is not None
    operands = [seqs,
                state['gru_wih_bd'], state['gru_whh_bd'], state['gru_bias'],
                state['wq'], state['bias_pack'], state['drug_memory'],
                state['wo1'], state['wo2'], cf_mean, state['med_emb'],
                state['wf']]
    if has_history:
        operands.append(hist)
    return _fused_forward(tuple(operands), E, Vm, has_history)


# ---------------------------------- main -----------------------------------

if __name__ == "__main__":
    vocab_size = (20, 15, 12, 8, 16)   # (diag, pro, age, heart-rate, med) vocab sizes
    emb_dim = 32

    params = init_params(jax.random.PRNGKey(0), vocab_size, emb_dim)

    rng = np.random.RandomState(0)
    Vm = vocab_size[-1]
    ehr_adj = (rng.rand(Vm, Vm) < 0.3).astype(np.float32)
    ehr_adj = np.maximum(ehr_adj, ehr_adj.T)

    state = prepare_model(params, ehr_adj, vocab_size, emb_dim)

    # input: tuple of admissions; each adm = (diag_codes, procedure_codes, med_codes)
    input_adms = (
        ((1, 3, 5), (0, 2), (4, 7)),
        ((2, 6, 9), (1, 4, 5), (3, 11)),
    )
    age = 5
    heart_rate = (2, 6)

    # TODO(synk): training-mode output (sigmoid outer-product batch_neg) is not
    # implemented; this script covers the eval-mode forward path only.
    inputs = prepare_admissions(input_adms, age, heart_rate, Vm)
    out = model_forward(state, *inputs)
    out = jax.block_until_ready(out)
    assert out.shape == (1, Vm) and out.dtype == jnp.float32

    print("KERNEL_OK")
</pallas_src>

<mosaic_0001>
module attributes {stable_mosaic.version = 11 : i64} {
  func.func @kernel(%arg0: memref<2x128xf32, #tpu.memory_space<vmem>>, %arg1: memref<128x768xf32, #tpu.memory_space<vmem>>, %arg2: memref<256x768xf32, #tpu.memory_space<vmem>>, %arg3: memref<2x768xf32, #tpu.memory_space<vmem>>, %arg4: memref<256x32xf32, #tpu.memory_space<vmem>>, %arg5: memref<4x128xf32, #tpu.memory_space<vmem>>, %arg6: memref<16x32xf32, #tpu.memory_space<vmem>>, %arg7: memref<96x64xf32, #tpu.memory_space<vmem>>, %arg8: memref<64x16xf32, #tpu.memory_space<vmem>>, %arg9: memref<1x32xf32, #tpu.memory_space<vmem>>, %arg10: memref<16x32xf32, #tpu.memory_space<vmem>>, %arg11: memref<32x16xf32, #tpu.memory_space<vmem>>, %arg12: memref<1x16xf32, #tpu.memory_space<vmem>>, %arg13: memref<1x16xf32, #tpu.memory_space<vmem>>) attributes {dimension_semantics = [], scalar_prefetch = 0 : i64, scratch_operands = 0 : i64, tpu.core_type = #tpu.core_type<tc>} {
    %c0 = arith.constant 0 : index
    %c0_0 = arith.constant 0 : index
    %0 = vector.load %arg0[%c0, %c0_0] : memref<2x128xf32, #tpu.memory_space<vmem>>, vector<2x128xf32>
    %c0_1 = arith.constant 0 : index
    %c0_2 = arith.constant 0 : index
    %1 = vector.load %arg1[%c0_1, %c0_2] : memref<128x768xf32, #tpu.memory_space<vmem>>, vector<128x768xf32>
    %cst = arith.constant dense<0.000000e+00> : vector<2x768xf32>
    %2 = tpu.matmul %0, %1, %cst {dimension_numbers = #tpu.dot_dimension_numbers<[1], [0], [0], [1], [0, 0, 1, 1], [], []>} : vector<2x128xf32>, vector<128x768xf32>, vector<2x768xf32> -> vector<2x768xf32>
    %c0_3 = arith.constant 0 : index
    %c0_4 = arith.constant 0 : index
    %3 = vector.load %arg3[%c0_3, %c0_4] : memref<2x768xf32, #tpu.memory_space<vmem>>, vector<1x768xf32>
    %4 = vector.broadcast %3 : vector<1x768xf32> to vector<2x768xf32>
    %5 = arith.addf %2, %4 : vector<2x768xf32>
    %c0_5 = arith.constant 0 : index
    %c0_6 = arith.constant 0 : index
    %6 = vector.load %arg2[%c0_5, %c0_6] : memref<256x768xf32, #tpu.memory_space<vmem>>, vector<256x768xf32>
    %c1 = arith.constant 1 : index
    %c0_7 = arith.constant 0 : index
    %7 = vector.load %arg3[%c1, %c0_7] : memref<2x768xf32, #tpu.memory_space<vmem>>, vector<1x768xf32>
    %cst_8 = arith.constant 0.000000e+00 : f32
    %8 = vector.broadcast %cst_8 : f32 to vector<1x256xf32>
    %9 = vector.extract_strided_slice %5 {offsets = [0, 0], sizes = [1, 768], strides = [1, 1]} : vector<2x768xf32> to vector<1x768xf32>
    %cst_9 = arith.constant dense<0.000000e+00> : vector<1x768xf32>
    %10 = tpu.matmul %8, %6, %cst_9 {dimension_numbers = #tpu.dot_dimension_numbers<[1], [0], [0], [1], [0, 0, 1, 1], [], []>} : vector<1x256xf32>, vector<256x768xf32>, vector<1x768xf32> -> vector<1x768xf32>
    %11 = arith.addf %10, %7 : vector<1x768xf32>
    %12 = vector.extract_strided_slice %9 {offsets = [0, 0], sizes = [1, 256], strides = [1, 1]} : vector<1x768xf32> to vector<1x256xf32>
    %13 = vector.extract_strided_slice %11 {offsets = [0, 0], sizes = [1, 256], strides = [1, 1]} : vector<1x768xf32> to vector<1x256xf32>
    %14 = arith.addf %12, %13 : vector<1x256xf32>
    %15 = arith.negf %14 : vector<1x256xf32>
    %16 = math.exp %15 : vector<1x256xf32>
    %cst_10 = arith.constant 1.000000e+00 : f32
    %17 = vector.broadcast %cst_10 : f32 to vector<1x256xf32>
    %18 = arith.addf %17, %16 : vector<1x256xf32>
    %19 = arith.divf %17, %18 : vector<1x256xf32>
    %20 = vector.extract_strided_slice %9 {offsets = [0, 256], sizes = [1, 256], strides = [1, 1]} : vector<1x768xf32> to vector<1x256xf32>
    %21 = vector.extract_strided_slice %11 {offsets = [0, 256], sizes = [1, 256], strides = [1, 1]} : vector<1x768xf32> to vector<1x256xf32>
    %22 = arith.addf %20, %21 : vector<1x256xf32>
    %23 = arith.negf %22 : vector<1x256xf32>
    %24 = math.exp %23 : vector<1x256xf32>
    %cst_11 = arith.constant 1.000000e+00 : f32
    %25 = vector.broadcast %cst_11 : f32 to vector<1x256xf32>
    %26 = arith.addf %25, %24 : vector<1x256xf32>
    %27 = arith.divf %25, %26 : vector<1x256xf32>
    %28 = vector.extract_strided_slice %9 {offsets = [0, 512], sizes = [1, 256], strides = [1, 1]} : vector<1x768xf32> to vector<1x256xf32>
    %29 = vector.extract_strided_slice %11 {offsets = [0, 512], sizes = [1, 256], strides = [1, 1]} : vector<1x768xf32> to vector<1x256xf32>
    %30 = arith.mulf %19, %29 : vector<1x256xf32>
    %31 = arith.addf %28, %30 : vector<1x256xf32>
    %32 = math.tanh %31 : vector<1x256xf32>
    %cst_12 = arith.constant 1.000000e+00 : f32
    %33 = vector.broadcast %cst_12 : f32 to vector<1x256xf32>
    %34 = arith.subf %33, %27 : vector<1x256xf32>
    %35 = arith.mulf %34, %32 : vector<1x256xf32>
    %36 = arith.mulf %27, %8 : vector<1x256xf32>
    %37 = arith.addf %35, %36 : vector<1x256xf32>
    %38 = vector.extract_strided_slice %5 {offsets = [1, 0], sizes = [1, 768], strides = [1, 1]} : vector<2x768xf32> to vector<1x768xf32>
    %cst_13 = arith.constant dense<0.000000e+00> : vector<1x768xf32>
    %39 = tpu.matmul %37, %6, %cst_13 {dimension_numbers = #tpu.dot_dimension_numbers<[1], [0], [0], [1], [0, 0, 1, 1], [], []>} : vector<1x256xf32>, vector<256x768xf32>, vector<1x768xf32> -> vector<1x768xf32>
    %40 = arith.addf %39, %7 : vector<1x768xf32>
    %41 = vector.extract_strided_slice %38 {offsets = [0, 0], sizes = [1, 256], strides = [1, 1]} : vector<1x768xf32> to vector<1x256xf32>
    %42 = vector.extract_strided_slice %40 {offsets = [0, 0], sizes = [1, 256], strides = [1, 1]} : vector<1x768xf32> to vector<1x256xf32>
    %43 = arith.addf %41, %42 : vector<1x256xf32>
    %44 = arith.negf %43 : vector<1x256xf32>
    %45 = math.exp %44 : vector<1x256xf32>
    %cst_14 = arith.constant 1.000000e+00 : f32
    %46 = vector.broadcast %cst_14 : f32 to vector<1x256xf32>
    %47 = arith.addf %46, %45 : vector<1x256xf32>
    %48 = arith.divf %46, %47 : vector<1x256xf32>
    %49 = vector.extract_strided_slice %38 {offsets = [0, 256], sizes = [1, 256], strides = [1, 1]} : vector<1x768xf32> to vector<1x256xf32>
    %50 = vector.extract_strided_slice %40 {offsets = [0, 256], sizes = [1, 256], strides = [1, 1]} : vector<1x768xf32> to vector<1x256xf32>
    %51 = arith.addf %49, %50 : vector<1x256xf32>
    %52 = arith.negf %51 : vector<1x256xf32>
    %53 = math.exp %52 : vector<1x256xf32>
    %cst_15 = arith.constant 1.000000e+00 : f32
    %54 = vector.broadcast %cst_15 : f32 to vector<1x256xf32>
    %55 = arith.addf %54, %53 : vector<1x256xf32>
    %56 = arith.divf %54, %55 : vector<1x256xf32>
    %57 = vector.extract_strided_slice %38 {offsets = [0, 512], sizes = [1, 256], strides = [1, 1]} : vector<1x768xf32> to vector<1x256xf32>
    %58 = vector.extract_strided_slice %40 {offsets = [0, 512], sizes = [1, 256], strides = [1, 1]} : vector<1x768xf32> to vector<1x256xf32>
    %59 = arith.mulf %48, %58 : vector<1x256xf32>
    %60 = arith.addf %57, %59 : vector<1x256xf32>
    %61 = math.tanh %60 : vector<1x256xf32>
    %cst_16 = arith.constant 1.000000e+00 : f32
    %62 = vector.broadcast %cst_16 : f32 to vector<1x256xf32>
    %63 = arith.subf %62, %56 : vector<1x256xf32>
    %64 = arith.mulf %63, %61 : vector<1x256xf32>
    %65 = arith.mulf %56, %37 : vector<1x256xf32>
    %66 = arith.addf %64, %65 : vector<1x256xf32>
    %67 = tpu.concatenate %37, %66 in 0 : vector<1x256xf32>, vector<1x256xf32> -> vector<2x256xf32>
    %c0_17 = arith.constant 0 : index
    %c0_18 = arith.constant 0 : index
    %68 = vector.load %arg5[%c0_17, %c0_18] : memref<4x128xf32, #tpu.memory_space<vmem>>, vector<1x32xf32>
    %cst_19 = arith.constant 0.000000e+00 : f32
    %69 = vector.broadcast %cst_19 : f32 to vector<2x256xf32>
    %70 = arith.maximumf %67, %69 : vector<2x256xf32>
    %c0_20 = arith.constant 0 : index
    %c0_21 = arith.constant 0 : index
    %71 = vector.load %arg4[%c0_20, %c0_21] : memref<256x32xf32, #tpu.memory_space<vmem>>, vector<256x32xf32>
    %cst_22 = arith.constant dense<0.000000e+00> : vector<2x32xf32>
    %72 = tpu.matmul %70, %71, %cst_22 {dimension_numbers = #tpu.dot_dimension_numbers<[1], [0], [0], [1], [0, 0, 1, 1], [], []>} : vector<2x256xf32>, vector<256x32xf32>, vector<2x32xf32> -> vector<2x32xf32>
    %73 = vector.broadcast %68 : vector<1x32xf32> to vector<2x32xf32>
    %74 = arith.addf %72, %73 : vector<2x32xf32>
    %75 = vector.extract_strided_slice %74 {offsets = [1, 0], sizes = [1, 32], strides = [1, 1]} : vector<2x32xf32> to vector<1x32xf32>
    %c0_23 = arith.constant 0 : index
    %c0_24 = arith.constant 0 : index
    %76 = vector.load %arg6[%c0_23, %c0_24] : memref<16x32xf32, #tpu.memory_space<vmem>>, vector<16x32xf32>
    %cst_25 = arith.constant dense<0.000000e+00> : vector<1x16xf32>
    %77 = tpu.matmul %75, %76, %cst_25 {dimension_numbers = #tpu.dot_dimension_numbers<[1], [1], [0], [0], [0, 0, 1, 0], [], []>} : vector<1x32xf32>, vector<16x32xf32>, vector<1x16xf32> -> vector<1x16xf32>
    %cst_26 = arith.constant dense<0xFF800000> : vector<1xf32>
    %78 = vector.multi_reduction <maximumf>, %77, %cst_26 [1] : vector<1x16xf32> to vector<1xf32>
    %79 = vector.shape_cast %78 : vector<1xf32> to vector<1x1xf32>
    %80 = vector.broadcast %79 : vector<1x1xf32> to vector<1x16xf32>
    %81 = arith.subf %77, %80 : vector<1x16xf32>
    %82 = math.exp %81 : vector<1x16xf32>
    %cst_27 = arith.constant dense<0.000000e+00> : vector<1xf32>
    %83 = vector.multi_reduction <add>, %82, %cst_27 [1] : vector<1x16xf32> to vector<1xf32>
    %84 = vector.shape_cast %83 : vector<1xf32> to vector<1x1xf32>
    %85 = vector.broadcast %84 : vector<1x1xf32> to vector<1x16xf32>
    %86 = arith.divf %82, %85 : vector<1x16xf32>
    %cst_28 = arith.constant dense<0.000000e+00> : vector<1x32xf32>
    %87 = tpu.matmul %86, %76, %cst_28 {dimension_numbers = #tpu.dot_dimension_numbers<[1], [0], [0], [1], [0, 0, 1, 1], [], []>} : vector<1x16xf32>, vector<16x32xf32>, vector<1x32xf32> -> vector<1x32xf32>
    %88 = vector.extract_strided_slice %74 {offsets = [0, 0], sizes = [1, 32], strides = [1, 1]} : vector<2x32xf32> to vector<1x32xf32>
    %cst_29 = arith.constant dense<0.000000e+00> : vector<1x1xf32>
    %89 = tpu.matmul %75, %88, %cst_29 {dimension_numbers = #tpu.dot_dimension_numbers<[1], [1], [0], [0], [0, 0, 1, 0], [], []>} : vector<1x32xf32>, vector<1x32xf32>, vector<1x1xf32> -> vector<1x1xf32>
    %cst_30 = arith.constant dense<0xFF800000> : vector<1xf32>
    %90 = vector.multi_reduction <maximumf>, %89, %cst_30 [1] : vector<1x1xf32> to vector<1xf32>
    %91 = vector.shape_cast %90 : vector<1xf32> to vector<1x1xf32>
    %92 = arith.subf %89, %91 : vector<1x1xf32>
    %93 = math.exp %92 : vector<1x1xf32>
    %cst_31 = arith.constant dense<0.000000e+00> : vector<1xf32>
    %94 = vector.multi_reduction <add>, %93, %cst_31 [1] : vector<1x1xf32> to vector<1xf32>
    %95 = vector.shape_cast %94 : vector<1xf32> to vector<1x1xf32>
    %96 = arith.divf %93, %95 : vector<1x1xf32>
    %c0_32 = arith.constant 0 : index
    %c0_33 = arith.constant 0 : index
    %97 = vector.load %arg12[%c0_32, %c0_33] : memref<1x16xf32, #tpu.memory_space<vmem>>, vector<1x16xf32>
    %cst_34 = arith.constant dense<0.000000e+00> : vector<1x16xf32>
    %98 = tpu.matmul %96, %97, %cst_34 {dimension_numbers = #tpu.dot_dimension_numbers<[1], [0], [0], [1], [0, 0, 1, 1], [], []>} : vector<1x1xf32>, vector<1x16xf32>, vector<1x16xf32> -> vector<1x16xf32>
    %cst_35 = arith.constant dense<0.000000e+00> : vector<1x32xf32>
    %99 = tpu.matmul %98, %76, %cst_35 {dimension_numbers = #tpu.dot_dimension_numbers<[1], [0], [0], [1], [0, 0, 1, 1], [], []>} : vector<1x16xf32>, vector<16x32xf32>, vector<1x32xf32> -> vector<1x32xf32>
    %c0_36 = arith.constant 0 : index
    %c0_37 = arith.constant 0 : index
    %100 = vector.load %arg7[%c0_36, %c0_37] : memref<96x64xf32, #tpu.memory_space<vmem>>, vector<96x64xf32>
    %c1_38 = arith.constant 1 : index
    %c0_39 = arith.constant 0 : index
    %101 = vector.load %arg5[%c1_38, %c0_39] : memref<4x128xf32, #tpu.memory_space<vmem>>, vector<1x64xf32>
    %cst_40 = arith.constant 0.000000e+00 : f32
    %102 = vector.broadcast %cst_40 : f32 to vector<1x32xf32>
    %103 = arith.maximumf %75, %102 : vector<1x32xf32>
    %104 = vector.extract_strided_slice %100 {offsets = [0, 0], sizes = [32, 64], strides = [1, 1]} : vector<96x64xf32> to vector<32x64xf32>
    %cst_41 = arith.constant dense<0.000000e+00> : vector<1x64xf32>
    %105 = tpu.matmul %103, %104, %cst_41 {dimension_numbers = #tpu.dot_dimension_numbers<[1], [0], [0], [1], [0, 0, 1, 1], [], []>} : vector<1x32xf32>, vector<32x64xf32>, vector<1x64xf32> -> vector<1x64xf32>
    %cst_42 = arith.constant 0.000000e+00 : f32
    %106 = vector.broadcast %cst_42 : f32 to vector<1x32xf32>
    %107 = arith.maximumf %87, %106 : vector<1x32xf32>
    %108 = vector.extract_strided_slice %100 {offsets = [32, 0], sizes = [32, 64], strides = [1, 1]} : vector<96x64xf32> to vector<32x64xf32>
    %cst_43 = arith.constant dense<0.000000e+00> : vector<1x64xf32>
    %109 = tpu.matmul %107, %108, %cst_43 {dimension_numbers = #tpu.dot_dimension_numbers<[1], [0], [0], [1], [0, 0, 1, 1], [], []>} : vector<1x32xf32>, vector<32x64xf32>, vector<1x64xf32> -> vector<1x64xf32>
    %110 = arith.addf %105, %109 : vector<1x64xf32>
    %cst_44 = arith.constant 0.000000e+00 : f32
    %111 = vector.broadcast %cst_44 : f32 to vector<1x32xf32>
    %112 = arith.maximumf %99, %111 : vector<1x32xf32>
    %113 = vector.extract_strided_slice %100 {offsets = [64, 0], sizes = [32, 64], strides = [1, 1]} : vector<96x64xf32> to vector<32x64xf32>
    %cst_45 = arith.constant dense<0.000000e+00> : vector<1x64xf32>
    %114 = tpu.matmul %112, %113, %cst_45 {dimension_numbers = #tpu.dot_dimension_numbers<[1], [0], [0], [1], [0, 0, 1, 1], [], []>} : vector<1x32xf32>, vector<32x64xf32>, vector<1x64xf32> -> vector<1x64xf32>
    %115 = arith.addf %110, %114 : vector<1x64xf32>
    %116 = arith.addf %115, %101 : vector<1x64xf32>
    %cst_46 = arith.constant 0.000000e+00 : f32
    %117 = vector.broadcast %cst_46 : f32 to vector<1x64xf32>
    %118 = arith.maximumf %116, %117 : vector<1x64xf32>
    %c2 = arith.constant 2 : index
    %c0_47 = arith.constant 0 : index
    %119 = vector.load %arg5[%c2, %c0_47] : memref<4x128xf32, #tpu.memory_space<vmem>>, vector<1x16xf32>
    %c0_48 = arith.constant 0 : index
    %c0_49 = arith.constant 0 : index
    %120 = vector.load %arg8[%c0_48, %c0_49] : memref<64x16xf32, #tpu.memory_space<vmem>>, vector<64x16xf32>
    %cst_50 = arith.constant dense<0.000000e+00> : vector<1x16xf32>
    %121 = tpu.matmul %118, %120, %cst_50 {dimension_numbers = #tpu.dot_dimension_numbers<[1], [0], [0], [1], [0, 0, 1, 1], [], []>} : vector<1x64xf32>, vector<64x16xf32>, vector<1x16xf32> -> vector<1x16xf32>
    %122 = arith.addf %121, %119 : vector<1x16xf32>
    %c0_51 = arith.constant 0 : index
    %c0_52 = arith.constant 0 : index
    %123 = vector.load %arg9[%c0_51, %c0_52] : memref<1x32xf32, #tpu.memory_space<vmem>>, vector<1x32xf32>
    %c0_53 = arith.constant 0 : index
    %c0_54 = arith.constant 0 : index
    %124 = vector.load %arg10[%c0_53, %c0_54] : memref<16x32xf32, #tpu.memory_space<vmem>>, vector<16x32xf32>
    %cst_55 = arith.constant dense<0.000000e+00> : vector<1x16xf32>
    %125 = tpu.matmul %123, %124, %cst_55 {dimension_numbers = #tpu.dot_dimension_numbers<[1], [1], [0], [0], [0, 0, 1, 0], [], []>} : vector<1x32xf32>, vector<16x32xf32>, vector<1x16xf32> -> vector<1x16xf32>
    %c0_56 = arith.constant 0 : index
    %c0_57 = arith.constant 0 : index
    %126 = vector.load %arg11[%c0_56, %c0_57] : memref<32x16xf32, #tpu.memory_space<vmem>>, vector<32x16xf32>
    %c3 = arith.constant 3 : index
    %c0_58 = arith.constant 0 : index
    %127 = vector.load %arg5[%c3, %c0_58] : memref<4x128xf32, #tpu.memory_space<vmem>>, vector<1x16xf32>
    %cst_59 = arith.constant 0.000000e+00 : f32
    %128 = vector.broadcast %cst_59 : f32 to vector<1x16xf32>
    %129 = arith.maximumf %122, %128 : vector<1x16xf32>
    %130 = vector.extract_strided_slice %126 {offsets = [0, 0], sizes = [16, 16], strides = [1, 1]} : vector<32x16xf32> to vector<16x16xf32>
    %cst_60 = arith.constant dense<0.000000e+00> : vector<1x16xf32>
    %131 = tpu.matmul %129, %130, %cst_60 {dimension_numbers = #tpu.dot_dimension_numbers<[1], [0], [0], [1], [0, 0, 1, 1], [], []>} : vector<1x16xf32>, vector<16x16xf32>, vector<1x16xf32> -> vector<1x16xf32>
    %cst_61 = arith.constant 0.000000e+00 : f32
    %132 = vector.broadcast %cst_61 : f32 to vector<1x16xf32>
    %133 = arith.maximumf %125, %132 : vector<1x16xf32>
    %134 = vector.extract_strided_slice %126 {offsets = [16, 0], sizes = [16, 16], strides = [1, 1]} : vector<32x16xf32> to vector<16x16xf32>
    %cst_62 = arith.constant dense<0.000000e+00> : vector<1x16xf32>
    %135 = tpu.matmul %133, %134, %cst_62 {dimension_numbers = #tpu.dot_dimension_numbers<[1], [0], [0], [1], [0, 0, 1, 1], [], []>} : vector<1x16xf32>, vector<16x16xf32>, vector<1x16xf32> -> vector<1x16xf32>
    %136 = arith.addf %131, %135 : vector<1x16xf32>
    %137 = arith.addf %136, %127 : vector<1x16xf32>
    %c0_63 = arith.constant 0 : index
    %c0_64 = arith.constant 0 : index
    %138 = vector.load %arg13[%c0_63, %c0_64] : memref<1x16xf32, #tpu.memory_space<vmem>>, vector<1x16xf32>
    tpu.vector_store %arg13[%c0_63, %c0_64], %137 {strides = array<i32>} : memref<1x16xf32, #tpu.memory_space<vmem>>, vector<1x16xf32>,
    return
  }
}

</mosaic_0001>

<llo_original>
// kernel: model_forward.1
$region0: #{model_forward.1}
  #allocation0 [shape = 'u32[]', space=smem, size = 0x4, offset = 0x4, fixed_abs, tag = 'smem constant byte address 0x4 - core index']
  #allocation1 [shape = 'u32[144,128]{1,0:T(1,128)}', space=vmem, size = 0x12000, scoped, tag = 'internal scratch']
  %s0 = inlined_call_operand.vmem [shape: f32[2,128], index: 0, kind: input, shape index: {}]
  %s1 = inlined_call_operand.vmem [shape: f32[128,768], index: 1, kind: input, shape index: {}]
  %s2 = inlined_call_operand.hbm [shape: f32[256,768], index: 2, kind: input, shape index: {}]
  %s3 = inlined_call_operand.vmem [shape: f32[2,768], index: 3, kind: input, shape index: {}]
  %s4 = inlined_call_operand.vmem [shape: f32[256,32], index: 4, kind: input, shape index: {}]
  %s5 = inlined_call_operand.vmem [shape: f32[4,128], index: 5, kind: input, shape index: {}]
  %s6 = inlined_call_operand.vmem [shape: f32[16,32], index: 6, kind: input, shape index: {}]
  %s7 = inlined_call_operand.vmem [shape: f32[96,64], index: 7, kind: input, shape index: {}]
  %s8 = inlined_call_operand.vmem [shape: f32[64,16], index: 8, kind: input, shape index: {}]
  %s9 = inlined_call_operand.vmem [shape: f32[1,32], index: 9, kind: input, shape index: {}]
  %s10 = inlined_call_operand.vmem [shape: f32[16,32], index: 10, kind: input, shape index: {}]
  %s11 = inlined_call_operand.vmem [shape: f32[32,16], index: 11, kind: input, shape index: {}]
  %s12 = inlined_call_operand.vmem [shape: f32[1,16], index: 12, kind: input, shape index: {}]
  %s13 = inlined_call_operand.hbm [shape: f32[1,16], index: 13, kind: output, shape index: {}]
  %s14 = sld [smem:[#allocation0]]
  $region66: #{model_forward.1} parent=0
    _
  %s16 = ssub.s32 1, %s14
  %s17 = scalar_select 0, %s16, %s14
  $region1: #{model_forward.1} parent=0
    #allocation2 [shape = 'u8[786432]{0}', space=vmem, size = 0xc0000, scoped, tag = 'input window, operand 2, single buffered']
    #allocation3 [shape = 's32[1]{0}', space=sflag, size = 0x4, scoped, tag = 'scoped memory for model_forward.1']
    #allocation4 [shape = 's32[1]{0}', space=sflag, size = 0x4, scoped, tag = 'scoped memory for model_forward.1']
    #allocation5 [shape = 'u8[512]{0}', space=vmem, size = 0x400, scoped, tag = 'output window, operand 0, single buffered']
    %18 = vsyncpa [#allocation3], 0
    %19 = vsyncpa [#allocation4], 0
    // Predicated region
    $region2: #{model_forward.1} parent=1 // pred_check
      _
    $region3: #{model_forward.1} parent=1 // pred_check_branch
      %21 = sbr.rel (0) target = $region5
    $region4: #{model_forward.1} parent=1 // pred_region
      _
    $region5: #{model_forward.1} parent=1 // pred_fallthru
      _
    // Predicated region
    $region6: #{model_forward.1} parent=1 // pred_check
      _
    $region7: #{model_forward.1} parent=1 // pred_check_branch
      %23 = sbr.rel (0) target = $region9
    $region8: #{model_forward.1} parent=1 // pred_region
      _
    $region9: #{model_forward.1} parent=1 // pred_fallthru
      _
    // Predicated region
    $region10: #{model_forward.1} parent=1 // pred_check
      _
    $region11: #{model_forward.1} parent=1 // pred_check_branch
      %25 = sbr.rel (0) target = $region13
    $region12: #{model_forward.1} parent=1 // pred_region
      %s27 = ssub.s32 24576, 24576
      %28 = vsyncadd [#allocation3], %s27
      %s29 = sshll.u32 [#allocation2], 4
      %s30 = int_to_ptr.vmem [resolvable:$true] %s29
      %35 = dma.hbm_to_vmem [thread:$0]  %s2, 24576, %s30, [#allocation3], 768, 768, 48
    $region13: #{model_forward.1} parent=1 // pred_fallthru
      _
    // Predicated region
    $region14: #{model_forward.1} parent=1 // pred_check
      _
    $region15: #{model_forward.1} parent=1 // pred_check_branch
      %37 = sbr.rel (0) target = $region17
    $region16: #{model_forward.1} parent=1 // pred_region
      _
    $region17: #{model_forward.1} parent=1 // pred_fallthru
      _
    // Predicated region
    $region18: #{model_forward.1} parent=1 // pred_check
      _
    $region19: #{model_forward.1} parent=1 // pred_check_branch
      %39 = sbr.rel (0) target = $region21
    $region20: #{model_forward.1} parent=1 // pred_region
      _
    $region21: #{model_forward.1} parent=1 // pred_fallthru
      _
    // Predicated region
    $region22: #{model_forward.1} parent=1 // pred_check
      _
    $region23: #{model_forward.1} parent=1 // pred_check_branch
      %41 = sbr.rel (0) target = $region25
    $region24: #{model_forward.1} parent=1 // pred_region
      _
    $region25: #{model_forward.1} parent=1 // pred_fallthru
      _
    // Predicated region
    $region26: #{model_forward.1} parent=1 // pred_check
      _
    $region27: #{model_forward.1} parent=1 // pred_check_branch
      %43 = sbr.rel (0) target = $region29
    $region28: #{model_forward.1} parent=1 // pred_region
      _
    $region29: #{model_forward.1} parent=1 // pred_fallthru
      _
    // Predicated region
    $region30: #{model_forward.1} parent=1 // pred_check
      _
    $region31: #{model_forward.1} parent=1 // pred_check_branch
      %45 = sbr.rel (0) target = $region33
    $region32: #{model_forward.1} parent=1 // pred_region
      _
    $region33: #{model_forward.1} parent=1 // pred_fallthru
      _
    // Predicated region
    $region34: #{model_forward.1} parent=1 // pred_check
      _
    $region35: #{model_forward.1} parent=1 // pred_check_branch
      %47 = sbr.rel (0) target = $region37
    $region36: #{model_forward.1} parent=1 // pred_region
      _
    $region37: #{model_forward.1} parent=1 // pred_fallthru
      _
    // Predicated region
    $region38: #{model_forward.1} parent=1 // pred_check
      _
    $region39: #{model_forward.1} parent=1 // pred_check_branch
      %49 = sbr.rel (0) target = $region41
    $region40: #{model_forward.1} parent=1 // pred_region
      _
    $region41: #{model_forward.1} parent=1 // pred_fallthru
      _
    // Predicated region
    $region42: #{model_forward.1} parent=1 // pred_check
      _
    $region43: #{model_forward.1} parent=1 // pred_check_branch
      %51 = sbr.rel (0) target = $region45
    $region44: #{model_forward.1} parent=1 // pred_region
      _
    $region45: #{model_forward.1} parent=1 // pred_fallthru
      _
    // Predicated region
    $region46: #{model_forward.1} parent=1 // pred_check
      _
    $region47: #{model_forward.1} parent=1 // pred_check_branch
      %53 = sbr.rel (0) target = $region49
    $region48: #{model_forward.1} parent=1 // pred_region
      _
    $region49: #{model_forward.1} parent=1 // pred_fallthru
      _
    // Predicated region
    $region50: #{model_forward.1} parent=1 // pred_check
      _
    $region51: #{model_forward.1} parent=1 // pred_check_branch
      %55 = sbr.rel (0) target = $region53
    $region52: #{model_forward.1} parent=1 // pred_region
      _
    $region53: #{model_forward.1} parent=1 // pred_fallthru
      _
    // Predicated region
    $region54: #{model_forward.1} parent=1 // pred_check
      _
    $region55: #{model_forward.1} parent=1 // pred_check_branch
      %57 = sbr.rel (0) target = $region57
    $region56: #{model_forward.1} parent=1 // pred_region
      %58 = dma.done [#allocation3], 24576
    $region57: #{model_forward.1} parent=1 // pred_fallthru
      _
    %v59 = vld [vmem:[%s0] sm:$0x3]
    %v60 = vld [vmem:[%s1] sm:$0xff]
    %v61 = vld [vmem:[%s1 + $0x8] sm:$0xff]
    %v62 = vld [vmem:[%s1 + $0x10] sm:$0xff]
    %v63 = vld [vmem:[%s1 + $0x18] sm:$0xff]
    %v64 = vld [vmem:[%s1 + $0x20] sm:$0xff]
    %v65 = vld [vmem:[%s1 + $0x28] sm:$0xff]
    %v66 = vld [vmem:[%s1 + $0x30] sm:$0xff]
    %v67 = vld [vmem:[%s1 + $0x38] sm:$0xff]
    %v68 = vld [vmem:[%s1 + $0x40] sm:$0xff]
    %v69 = vld [vmem:[%s1 + $0x48] sm:$0xff]
    %v70 = vld [vmem:[%s1 + $0x50] sm:$0xff]
    %v71 = vld [vmem:[%s1 + $0x58] sm:$0xff]
    %v72 = vld [vmem:[%s1 + $0x60] sm:$0xff]
    %v73 = vld [vmem:[%s1 + $0x68] sm:$0xff]
    %v74 = vld [vmem:[%s1 + $0x70] sm:$0xff]
    %v75 = vld [vmem:[%s1 + $0x78] sm:$0xff]
    %v76 = vld [vmem:[%s1 + $0x80] sm:$0xff]
    %v77 = vld [vmem:[%s1 + $0x88] sm:$0xff]
    %v78 = vld [vmem:[%s1 + $0x90] sm:$0xff]
    %v79 = vld [vmem:[%s1 + $0x98] sm:$0xff]
    %v80 = vld [vmem:[%s1 + $0xa0] sm:$0xff]
    %v81 = vld [vmem:[%s1 + $0xa8] sm:$0xff]
    %v82 = vld [vmem:[%s1 + $0xb0] sm:$0xff]
    %v83 = vld [vmem:[%s1 + $0xb8] sm:$0xff]
    %v84 = vld [vmem:[%s1 + $0xc0] sm:$0xff]
    %v85 = vld [vmem:[%s1 + $0xc8] sm:$0xff]
    %v86 = vld [vmem:[%s1 + $0xd0] sm:$0xff]
    %v87 = vld [vmem:[%s1 + $0xd8] sm:$0xff]
    %v88 = vld [vmem:[%s1 + $0xe0] sm:$0xff]
    %v89 = vld [vmem:[%s1 + $0xe8] sm:$0xff]
    %v90 = vld [vmem:[%s1 + $0xf0] sm:$0xff]
    %v91 = vld [vmem:[%s1 + $0xf8] sm:$0xff]
    %v92 = vld [vmem:[%s1 + $0x100] sm:$0xff]
    %v93 = vld [vmem:[%s1 + $0x108] sm:$0xff]
    %v94 = vld [vmem:[%s1 + $0x110] sm:$0xff]
    %v95 = vld [vmem:[%s1 + $0x118] sm:$0xff]
    %v96 = vld [vmem:[%s1 + $0x120] sm:$0xff]
    %v97 = vld [vmem:[%s1 + $0x128] sm:$0xff]
    %v98 = vld [vmem:[%s1 + $0x130] sm:$0xff]
    %v99 = vld [vmem:[%s1 + $0x138] sm:$0xff]
    %v100 = vld [vmem:[%s1 + $0x140] sm:$0xff]
    %v101 = vld [vmem:[%s1 + $0x148] sm:$0xff]
    %v102 = vld [vmem:[%s1 + $0x150] sm:$0xff]
    %v103 = vld [vmem:[%s1 + $0x158] sm:$0xff]
    %v104 = vld [vmem:[%s1 + $0x160] sm:$0xff]
    %v105 = vld [vmem:[%s1 + $0x168] sm:$0xff]
    %v106 = vld [vmem:[%s1 + $0x170] sm:$0xff]
    %v107 = vld [vmem:[%s1 + $0x178] sm:$0xff]
    %v108 = vld [vmem:[%s1 + $0x180] sm:$0xff]
    %v109 = vld [vmem:[%s1 + $0x188] sm:$0xff]
    %v110 = vld [vmem:[%s1 + $0x190] sm:$0xff]
    %v111 = vld [vmem:[%s1 + $0x198] sm:$0xff]
    %v112 = vld [vmem:[%s1 + $0x1a0] sm:$0xff]
    %v113 = vld [vmem:[%s1 + $0x1a8] sm:$0xff]
    %v114 = vld [vmem:[%s1 + $0x1b0] sm:$0xff]
    %v115 = vld [vmem:[%s1 + $0x1b8] sm:$0xff]
    %v116 = vld [vmem:[%s1 + $0x1c0] sm:$0xff]
    %v117 = vld [vmem:[%s1 + $0x1c8] sm:$0xff]
    %v118 = vld [vmem:[%s1 + $0x1d0] sm:$0xff]
    %v119 = vld [vmem:[%s1 + $0x1d8] sm:$0xff]
    %v120 = vld [vmem:[%s1 + $0x1e0] sm:$0xff]
    %v121 = vld [vmem:[%s1 + $0x1e8] sm:$0xff]
    %v122 = vld [vmem:[%s1 + $0x1f0] sm:$0xff]
    %v123 = vld [vmem:[%s1 + $0x1f8] sm:$0xff]
    %v124 = vld [vmem:[%s1 + $0x200] sm:$0xff]
    %v125 = vld [vmem:[%s1 + $0x208] sm:$0xff]
    %v126 = vld [vmem:[%s1 + $0x210] sm:$0xff]
    %v127 = vld [vmem:[%s1 + $0x218] sm:$0xff]
    %v128 = vld [vmem:[%s1 + $0x220] sm:$0xff]
    %v129 = vld [vmem:[%s1 + $0x228] sm:$0xff]
    %v130 = vld [vmem:[%s1 + $0x230] sm:$0xff]
    %v131 = vld [vmem:[%s1 + $0x238] sm:$0xff]
    %v132 = vld [vmem:[%s1 + $0x240] sm:$0xff]
    %v133 = vld [vmem:[%s1 + $0x248] sm:$0xff]
    %v134 = vld [vmem:[%s1 + $0x250] sm:$0xff]
    %v135 = vld [vmem:[%s1 + $0x258] sm:$0xff]
    %v136 = vld [vmem:[%s1 + $0x260] sm:$0xff]
    %v137 = vld [vmem:[%s1 + $0x268] sm:$0xff]
    %v138 = vld [vmem:[%s1 + $0x270] sm:$0xff]
    %v139 = vld [vmem:[%s1 + $0x278] sm:$0xff]
    %v140 = vld [vmem:[%s1 + $0x280] sm:$0xff]
    %v141 = vld [vmem:[%s1 + $0x288] sm:$0xff]
    %v142 = vld [vmem:[%s1 + $0x290] sm:$0xff]
    %v143 = vld [vmem:[%s1 + $0x298] sm:$0xff]
    %v144 = vld [vmem:[%s1 + $0x2a0] sm:$0xff]
    %v145 = vld [vmem:[%s1 + $0x2a8] sm:$0xff]
    %v146 = vld [vmem:[%s1 + $0x2b0] sm:$0xff]
    %v147 = vld [vmem:[%s1 + $0x2b8] sm:$0xff]
    %v148 = vld [vmem:[%s1 + $0x2c0] sm:$0xff]
    %v149 = vld [vmem:[%s1 + $0x2c8] sm:$0xff]
    %v150 = vld [vmem:[%s1 + $0x2d0] sm:$0xff]
    %v151 = vld [vmem:[%s1 + $0x2d8] sm:$0xff]
    %v152 = vld [vmem:[%s1 + $0x2e0] sm:$0xff]
    %v153 = vld [vmem:[%s1 + $0x2e8] sm:$0xff]
    %v154 = vld [vmem:[%s1 + $0x2f0] sm:$0xff]
    %v155 = vld [vmem:[%s1 + $0x2f8] sm:$0xff]
    %v156 = vld [vmem:[%s3] ss:$2 sm:$0x3f]
    %v158 = vlaneseq
    %v159 = vshrl.u32 %v158, 7
    %v160 = vsub.s32 0, %v159
    %v161 = vrot.slane %v156, %v160
    %v162 = vlaneseq
    %v163 = vshrl.u32 %v162, 7
    %v164 = vsub.s32 1, %v163
    %v165 = vrot.slane %v156, %v164
    %v166 = vlaneseq
    %v167 = vshrl.u32 %v166, 7
    %v168 = vsub.s32 2, %v167
    %v169 = vrot.slane %v156, %v168
    %v170 = vlaneseq
    %v171 = vshrl.u32 %v170, 7
    %v172 = vsub.s32 3, %v171
    %v173 = vrot.slane %v156, %v172
    %v174 = vlaneseq
    %v175 = vshrl.u32 %v174, 7
    %v176 = vsub.s32 4, %v175
    %v177 = vrot.slane %v156, %v176
    %v178 = vlaneseq
    %v179 = vshrl.u32 %v178, 7
    %v180 = vsub.s32 5, %v179
    %v181 = vrot.slane %v156, %v180
    %188 = vmatprep.subr.mxu0 %v151
    %189 = vmatpush1.msra.mxu0 %v150
    %190 = vmatprep.subr.mxu0 %v145
    %191 = vmatpush1.msra.mxu0 %v144
    %192 = vmatprep.subr.mxu0 %v139
    %193 = vmatpush1.msra.mxu0 %v138
    %194 = vmatprep.subr.mxu0 %v133
    %195 = vmatpush1.msra.mxu0 %v132
    %196 = vmatprep.subr.mxu0 %v127
    %197 = vmatpush1.msra.mxu0 %v126
    %198 = vmatprep.subr.mxu0 %v121
    %199 = vmatpush1.msra.mxu0 %v120
    %200 = vmatprep.subr.mxu0 %v115
    %201 = vmatpush1.msra.mxu0 %v114
    %202 = vmatprep.subr.mxu0 %v109
    %203 = vmatpush1.msra.mxu0 %v108
    %204 = vmatprep.subr.mxu0 %v103
    %205 = vmatpush1.msra.mxu0 %v102
    %206 = vmatprep.subr.mxu0 %v97
    %207 = vmatpush1.msra.mxu0 %v96
    %208 = vmatprep.subr.mxu0 %v91
    %209 = vmatpush1.msra.mxu0 %v90
    %210 = vmatprep.subr.mxu0 %v85
    %211 = vmatpush1.msra.mxu0 %v84
    %212 = vmatprep.subr.mxu0 %v79
    %213 = vmatpush1.msra.mxu0 %v78
    %214 = vmatprep.subr.mxu0 %v73
    %215 = vmatpush1.msra.mxu0 %v72
    %216 = vmatprep.subr.mxu0 %v67
    %217 = vmatpush1.msra.mxu0 %v66
    %218 = vmatprep.subr.mxu0 %v61
    %219 = vmatpush1.msra.mxu0 %v60
    %220 = vmatprep.subr.mxu0 0.0
    %221 = vmatpush2.msra.mxu0 0.0
    %222 = vmatprep.subr.mxu0 0.0
    %223 = vmatpush2.msra.mxu0 0.0
    %224 = vmatprep.subr.mxu0 0.0
    %225 = vmatpush2.msra.mxu0 0.0
    %226 = vmatprep.subr.mxu0 0.0
    %227 = vmatpush2.msra.mxu0 0.0
    %228 = vmatprep.subr.mxu0 0.0
    %229 = vmatpush2.msra.mxu0 0.0
    %230 = vmatprep.subr.mxu0 0.0
    %231 = vmatpush2.msra.mxu0 0.0
    %232 = vmatprep.subr.mxu0 0.0
    %233 = vmatpush2.msra.mxu0 0.0
    %234 = vmatprep.subr.mxu0 0.0
    %235 = vmatpush2.msra.mxu0 0.0
    %236 = vmatprep.subr.mxu0 0.0
    %237 = vmatpush2.msra.mxu0 0.0
    %238 = vmatprep.subr.mxu0 0.0
    %239 = vmatpush2.msra.mxu0 0.0
    %240 = vmatprep.subr.mxu0 0.0
    %241 = vmatpush2.msra.mxu0 0.0
    %242 = vmatprep.subr.mxu0 0.0
    %243 = vmatpush2.msra.mxu0 0.0
    %244 = vmatprep.subr.mxu0 0.0
    %245 = vmatpush2.msra.mxu0 0.0
    %246 = vmatprep.subr.mxu0 0.0
    %247 = vmatpush2.msra.mxu0 0.0
    %248 = vmatprep.subr.mxu0 0.0
    %249 = vmatpush2.msra.mxu0 0.0
    %250 = vmatprep.subr.mxu0 0.0
    %251 = vmatpush2.msra.mxu0 0.0
    %252 = vmatprep.mubr.f32.mxu0 0.0
    %253 = vmatmul.mubr.f32.gmra.mxu0 %v59
    %v254 = vpop.f32.mrf.mxu0
    %v255 = vadd.f32 %v161, %v254
    %v256 = vpop.f32.mrf.mxu0
    %v257 = vadd.f32 %v165, %v256
    %258 = vdwg.mxu0
    %259 = vmatprep.subr.mxu0 %v153
    %260 = vmatpush1.msra.mxu0 %v152
    %261 = vmatprep.subr.mxu0 %v147
    %262 = vmatpush1.msra.mxu0 %v146
    %263 = vmatprep.subr.mxu0 %v141
    %264 = vmatpush1.msra.mxu0 %v140
    %265 = vmatprep.subr.mxu0 %v135
    %266 = vmatpush1.msra.mxu0 %v134
    %267 = vmatprep.subr.mxu0 %v129
    %268 = vmatpush1.msra.mxu0 %v128
    %269 = vmatprep.subr.mxu0 %v123
    %270 = vmatpush1.msra.mxu0 %v122
    %271 = vmatprep.subr.mxu0 %v117
    %272 = vmatpush1.msra.mxu0 %v116
    %273 = vmatprep.subr.mxu0 %v111
    %274 = vmatpush1.msra.mxu0 %v110
    %275 = vmatprep.subr.mxu0 %v105
    %276 = vmatpush1.msra.mxu0 %v104
    %277 = vmatprep.subr.mxu0 %v99
    %278 = vmatpush1.msra.mxu0 %v98
    %279 = vmatprep.subr.mxu0 %v93
    %280 = vmatpush1.msra.mxu0 %v92
    %281 = vmatprep.subr.mxu0 %v87
    %282 = vmatpush1.msra.mxu0 %v86
    %283 = vmatprep.subr.mxu0 %v81
    %284 = vmatpush1.msra.mxu0 %v80
    %285 = vmatprep.subr.mxu0 %v75
    %286 = vmatpush1.msra.mxu0 %v74
    %287 = vmatprep.subr.mxu0 %v69
    %288 = vmatpush1.msra.mxu0 %v68
    %289 = vmatprep.subr.mxu0 %v63
    %290 = vmatpush1.msra.mxu0 %v62
    %291 = vmatprep.subr.mxu0 0.0
    %292 = vmatpush2.msra.mxu0 0.0
    %293 = vmatprep.subr.mxu0 0.0
    %294 = vmatpush2.msra.mxu0 0.0
    %295 = vmatprep.subr.mxu0 0.0
    %296 = vmatpush2.msra.mxu0 0.0
    %297 = vmatprep.subr.mxu0 0.0
    %298 = vmatpush2.msra.mxu0 0.0
    %299 = vmatprep.subr.mxu0 0.0
    %300 = vmatpush2.msra.mxu0 0.0
    %301 = vmatprep.subr.mxu0 0.0
    %302 = vmatpush2.msra.mxu0 0.0
    %303 = vmatprep.subr.mxu0 0.0
    %304 = vmatpush2.msra.mxu0 0.0
    %305 = vmatprep.subr.mxu0 0.0
    %306 = vmatpush2.msra.mxu0 0.0
    %307 = vmatprep.subr.mxu0 0.0
    %308 = vmatpush2.msra.mxu0 0.0
    %309 = vmatprep.subr.mxu0 0.0
    %310 = vmatpush2.msra.mxu0 0.0
    %311 = vmatprep.subr.mxu0 0.0
    %312 = vmatpush2.msra.mxu0 0.0
    %313 = vmatprep.subr.mxu0 0.0
    %314 = vmatpush2.msra.mxu0 0.0
    %315 = vmatprep.subr.mxu0 0.0
    %316 = vmatpush2.msra.mxu0 0.0
    %317 = vmatprep.subr.mxu0 0.0
    %318 = vmatpush2.msra.mxu0 0.0
    %319 = vmatprep.subr.mxu0 0.0
    %320 = vmatpush2.msra.mxu0 0.0
    %321 = vmatprep.subr.mxu0 0.0
    %322 = vmatpush2.msra.mxu0 0.0
    %323 = vmatprep.mubr.f32.mxu0 0.0
    %324 = vmatmul.mubr.f32.gmra.mxu0 %v59
    %v325 = vpop.f32.mrf.mxu0
    %v326 = vadd.f32 %v169, %v325
    %v327 = vpop.f32.mrf.mxu0
    %v328 = vadd.f32 %v173, %v327
    %329 = vdwg.mxu0
    %330 = vmatprep.subr.mxu0 %v155
    %331 = vmatpush1.msra.mxu0 %v154
    %332 = vmatprep.subr.mxu0 %v149
    %333 = vmatpush1.msra.mxu0 %v148
    %334 = vmatprep.subr.mxu0 %v143
    %335 = vmatpush1.msra.mxu0 %v142
    %336 = vmatprep.subr.mxu0 %v137
    %337 = vmatpush1.msra.mxu0 %v136
    %338 = vmatprep.subr.mxu0 %v131
    %339 = vmatpush1.msra.mxu0 %v130
    %340 = vmatprep.subr.mxu0 %v125
    %341 = vmatpush1.msra.mxu0 %v124
    %342 = vmatprep.subr.mxu0 %v119
    %343 = vmatpush1.msra.mxu0 %v118
    %344 = vmatprep.subr.mxu0 %v113
    %345 = vmatpush1.msra.mxu0 %v112
    %346 = vmatprep.subr.mxu0 %v107
    %347 = vmatpush1.msra.mxu0 %v106
    %348 = vmatprep.subr.mxu0 %v101
    %349 = vmatpush1.msra.mxu0 %v100
    %350 = vmatprep.subr.mxu0 %v95
    %351 = vmatpush1.msra.mxu0 %v94
    %352 = vmatprep.subr.mxu0 %v89
    %353 = vmatpush1.msra.mxu0 %v88
    %354 = vmatprep.subr.mxu0 %v83
    %355 = vmatpush1.msra.mxu0 %v82
    %356 = vmatprep.subr.mxu0 %v77
    %357 = vmatpush1.msra.mxu0 %v76
    %358 = vmatprep.subr.mxu0 %v71
    %359 = vmatpush1.msra.mxu0 %v70
    %360 = vmatprep.subr.mxu0 %v65
    %361 = vmatpush1.msra.mxu0 %v64
    %362 = vmatprep.subr.mxu0 0.0
    %363 = vmatpush2.msra.mxu0 0.0
    %364 = vmatprep.subr.mxu0 0.0
    %365 = vmatpush2.msra.mxu0 0.0
    %366 = vmatprep.subr.mxu0 0.0
    %367 = vmatpush2.msra.mxu0 0.0
    %368 = vmatprep.subr.mxu0 0.0
    %369 = vmatpush2.msra.mxu0 0.0
    %370 = vmatprep.subr.mxu0 0.0
    %371 = vmatpush2.msra.mxu0 0.0
    %372 = vmatprep.subr.mxu0 0.0
    %373 = vmatpush2.msra.mxu0 0.0
    %374 = vmatprep.subr.mxu0 0.0
    %375 = vmatpush2.msra.mxu0 0.0
    %376 = vmatprep.subr.mxu0 0.0
    %377 = vmatpush2.msra.mxu0 0.0
    %378 = vmatprep.subr.mxu0 0.0
    %379 = vmatpush2.msra.mxu0 0.0
    %380 = vmatprep.subr.mxu0 0.0
    %381 = vmatpush2.msra.mxu0 0.0
    %382 = vmatprep.subr.mxu0 0.0
    %383 = vmatpush2.msra.mxu0 0.0
    %384 = vmatprep.subr.mxu0 0.0
    %385 = vmatpush2.msra.mxu0 0.0
    %386 = vmatprep.subr.mxu0 0.0
    %387 = vmatpush2.msra.mxu0 0.0
    %388 = vmatprep.subr.mxu0 0.0
    %389 = vmatpush2.msra.mxu0 0.0
    %390 = vmatprep.subr.mxu0 0.0
    %391 = vmatpush2.msra.mxu0 0.0
    %392 = vmatprep.subr.mxu0 0.0
    %393 = vmatpush2.msra.mxu0 0.0
    %394 = vmatprep.mubr.f32.mxu0 0.0
    %395 = vmatmul.mubr.f32.gmra.mxu0 %v59
    %v396 = vpop.f32.mrf.mxu0
    %v397 = vadd.f32 %v177, %v396
    %v398 = vpop.f32.mrf.mxu0
    %v399 = vadd.f32 %v181, %v398
    %400 = vdwg.mxu0
    %v401 = vld [vmem:[#allocation2] sm:$0xff]
    %v402 = vld [vmem:[#allocation2 + $0x8] sm:$0xff]
    %v403 = vld [vmem:[#allocation2 + $0x10] sm:$0xff]
    %v404 = vld [vmem:[#allocation2 + $0x18] sm:$0xff]
    %v405 = vld [vmem:[#allocation2 + $0x20] sm:$0xff]
    %v406 = vld [vmem:[#allocation2 + $0x28] sm:$0xff]
    %v407 = vld [vmem:[#allocation2 + $0x30] sm:$0xff]
    %v408 = vld [vmem:[#allocation2 + $0x38] sm:$0xff]
    %v409 = vld [vmem:[#allocation2 + $0x40] sm:$0xff]
    %v410 = vld [vmem:[#allocation2 + $0x48] sm:$0xff]
    %v411 = vld [vmem:[#allocation2 + $0x50] sm:$0xff]
    %v412 = vld [vmem:[#allocation2 + $0x58] sm:$0xff]
    %v413 = vld [vmem:[#allocation2 + $0x60] sm:$0xff]
    %v414 = vld [vmem:[#allocation2 + $0x68] sm:$0xff]
    %v415 = vld [vmem:[#allocation2 + $0x70] sm:$0xff]
    %v416 = vld [vmem:[#allocation2 + $0x78] sm:$0xff]
    %v417 = vld [vmem:[#allocation2 + $0x80] sm:$0xff]
    %v418 = vld [vmem:[#allocation2 + $0x88] sm:$0xff]
    %v419 = vld [vmem:[#allocation2 + $0x90] sm:$0xff]
    %v420 = vld [vmem:[#allocation2 + $0x98] sm:$0xff]
    %v421 = vld [vmem:[#allocation2 + $0xa0] sm:$0xff]
    %v422 = vld [vmem:[#allocation2 + $0xa8] sm:$0xff]
    %v423 = vld [vmem:[#allocation2 + $0xb0] sm:$0xff]
    %v424 = vld [vmem:[#allocation2 + $0xb8] sm:$0xff]
    %v425 = vld [vmem:[#allocation2 + $0xc0] sm:$0xff]
    %v426 = vld [vmem:[#allocation2 + $0xc8] sm:$0xff]
    %v427 = vld [vmem:[#allocation2 + $0xd0] sm:$0xff]
    %v428 = vld [vmem:[#allocation2 + $0xd8] sm:$0xff]
    %v429 = vld [vmem:[#allocation2 + $0xe0] sm:$0xff]
    %v430 = vld [vmem:[#allocation2 + $0xe8] sm:$0xff]
    %v431 = vld [vmem:[#allocation2 + $0xf0] sm:$0xff]
    %v432 = vld [vmem:[#allocation2 + $0xf8] sm:$0xff]
    %v433 = vld [vmem:[#allocation2 + $0x100] sm:$0xff]
    %v434 = vld [vmem:[#allocation2 + $0x108] sm:$0xff]
    %v435 = vld [vmem:[#allocation2 + $0x110] sm:$0xff]
    %v436 = vld [vmem:[#allocation2 + $0x118] sm:$0xff]
    %v437 = vld [vmem:[#allocation2 + $0x120] sm:$0xff]
    %v438 = vld [vmem:[#allocation2 + $0x128] sm:$0xff]
    %v439 = vld [vmem:[#allocation2 + $0x130] sm:$0xff]
    %v440 = vld [vmem:[#allocation2 + $0x138] sm:$0xff]
    %v441 = vld [vmem:[#allocation2 + $0x140] sm:$0xff]
    %v442 = vld [vmem:[#allocation2 + $0x148] sm:$0xff]
    %v443 = vld [vmem:[#allocation2 + $0x150] sm:$0xff]
    %v444 = vld [vmem:[#allocation2 + $0x158] sm:$0xff]
    %v445 = vld [vmem:[#allocation2 + $0x160] sm:$0xff]
    %v446 = vld [vmem:[#allocation2 + $0x168] sm:$0xff]
    %v447 = vld [vmem:[#allocation2 + $0x170] sm:$0xff]
    %v448 = vld [vmem:[#allocation2 + $0x178] sm:$0xff]
    %v449 = vld [vmem:[#allocation2 + $0x180] sm:$0xff]
    %v450 = vld [vmem:[#allocation2 + $0x188] sm:$0xff]
    %v451 = vld [vmem:[#allocation2 + $0x190] sm:$0xff]
    %v452 = vld [vmem:[#allocation2 + $0x198] sm:$0xff]
    %v453 = vld [vmem:[#allocation2 + $0x1a0] sm:$0xff]
    %v454 = vld [vmem:[#allocation2 + $0x1a8] sm:$0xff]
    %v455 = vld [vmem:[#allocation2 + $0x1b0] sm:$0xff]
    %v456 = vld [vmem:[#allocation2 + $0x1b8] sm:$0xff]
    %v457 = vld [vmem:[#allocation2 + $0x1c0] sm:$0xff]
    %v458 = vld [vmem:[#allocation2 + $0x1c8] sm:$0xff]
    %v459 = vld [vmem:[#allocation2 + $0x1d0] sm:$0xff]
    %v460 = vld [vmem:[#allocation2 + $0x1d8] sm:$0xff]
    %v461 = vld [vmem:[#allocation2 + $0x1e0] sm:$0xff]
    %v462 = vld [vmem:[#allocation2 + $0x1e8] sm:$0xff]
    %v463 = vld [vmem:[#allocation2 + $0x1f0] sm:$0xff]
    %v464 = vld [vmem:[#allocation2 + $0x1f8] sm:$0xff]
    %v465 = vld [vmem:[#allocation2 + $0x200] sm:$0xff]
    %v466 = vld [vmem:[#allocation2 + $0x208] sm:$0xff]
    %v467 = vld [vmem:[#allocation2 + $0x210] sm:$0xff]
    %v468 = vld [vmem:[#allocation2 + $0x218] sm:$0xff]
    %v469 = vld [vmem:[#allocation2 + $0x220] sm:$0xff]
    %v470 = vld [vmem:[#allocation2 + $0x228] sm:$0xff]
    %v471 = vld [vmem:[#allocation2 + $0x230] sm:$0xff]
    %v472 = vld [vmem:[#allocation2 + $0x238] sm:$0xff]
    %v473 = vld [vmem:[#allocation2 + $0x240] sm:$0xff]
    %v474 = vld [vmem:[#allocation2 + $0x248] sm:$0xff]
    %v475 = vld [vmem:[#allocation2 + $0x250] sm:$0xff]
    %v476 = vld [vmem:[#allocation2 + $0x258] sm:$0xff]
    %v477 = vld [vmem:[#allocation2 + $0x260] sm:$0xff]
    %v478 = vld [vmem:[#allocation2 + $0x268] sm:$0xff]
    %v479 = vld [vmem:[#allocation2 + $0x270] sm:$0xff]
    %v480 = vld [vmem:[#allocation2 + $0x278] sm:$0xff]
    %v481 = vld [vmem:[#allocation2 + $0x280] sm:$0xff]
    %v482 = vld [vmem:[#allocation2 + $0x288] sm:$0xff]
    %v483 = vld [vmem:[#allocation2 + $0x290] sm:$0xff]
    %v484 = vld [vmem:[#allocation2 + $0x298] sm:$0xff]
    %v485 = vld [vmem:[#allocation2 + $0x2a0] sm:$0xff]
    %v486 = vld [vmem:[#allocation2 + $0x2a8] sm:$0xff]
    %v487 = vld [vmem:[#allocation2 + $0x2b0] sm:$0xff]
    %v488 = vld [vmem:[#allocation2 + $0x2b8] sm:$0xff]
    %v489 = vld [vmem:[#allocation2 + $0x2c0] sm:$0xff]
    %v490 = vld [vmem:[#allocation2 + $0x2c8] sm:$0xff]
    %v491 = vld [vmem:[#allocation2 + $0x2d0] sm:$0xff]
    %v492 = vld [vmem:[#allocation2 + $0x2d8] sm:$0xff]
    %v493 = vld [vmem:[#allocation2 + $0x2e0] sm:$0xff]
    %v494 = vld [vmem:[#allocation2 + $0x2e8] sm:$0xff]
    %v495 = vld [vmem:[#allocation2 + $0x2f0] sm:$0xff]
    %v496 = vld [vmem:[#allocation2 + $0x2f8] sm:$0xff]
    %v497 = vld [vmem:[#allocation2 + $0x300] sm:$0xff]
    %v498 = vld [vmem:[#allocation2 + $0x308] sm:$0xff]
    %v499 = vld [vmem:[#allocation2 + $0x310] sm:$0xff]
    %v500 = vld [vmem:[#allocation2 + $0x318] sm:$0xff]
    %v501 = vld [vmem:[#allocation2 + $0x320] sm:$0xff]
    %v502 = vld [vmem:[#allocation2 + $0x328] sm:$0xff]
    %v503 = vld [vmem:[#allocation2 + $0x330] sm:$0xff]
    %v504 = vld [vmem:[#allocation2 + $0x338] sm:$0xff]
    %v505 = vld [vmem:[#allocation2 + $0x340] sm:$0xff]
    %v506 = vld [vmem:[#allocation2 + $0x348] sm:$0xff]
    %v507 = vld [vmem:[#allocation2 + $0x350] sm:$0xff]
    %v508 = vld [vmem:[#allocation2 + $0x358] sm:$0xff]
    %v509 = vld [vmem:[#allocation2 + $0x360] sm:$0xff]
    %v510 = vld [vmem:[#allocation2 + $0x368] sm:$0xff]
    %v511 = vld [vmem:[#allocation2 + $0x370] sm:$0xff]
    %v512 = vld [vmem:[#allocation2 + $0x378] sm:$0xff]
    %v513 = vld [vmem:[#allocation2 + $0x380] sm:$0xff]
    %v514 = vld [vmem:[#allocation2 + $0x388] sm:$0xff]
    %v515 = vld [vmem:[#allocation2 + $0x390] sm:$0xff]
    %v516 = vld [vmem:[#allocation2 + $0x398] sm:$0xff]
    %v517 = vld [vmem:[#allocation2 + $0x3a0] sm:$0xff]
    %v518 = vld [vmem:[#allocation2 + $0x3a8] sm:$0xff]
    %v519 = vld [vmem:[#allocation2 + $0x3b0] sm:$0xff]
    %v520 = vld [vmem:[#allocation2 + $0x3b8] sm:$0xff]
    %v521 = vld [vmem:[#allocation2 + $0x3c0] sm:$0xff]
    %v522 = vld [vmem:[#allocation2 + $0x3c8] sm:$0xff]
    %v523 = vld [vmem:[#allocation2 + $0x3d0] sm:$0xff]
    %v524 = vld [vmem:[#allocation2 + $0x3d8] sm:$0xff]
    %v525 = vld [vmem:[#allocation2 + $0x3e0] sm:$0xff]
    %v526 = vld [vmem:[#allocation2 + $0x3e8] sm:$0xff]
    %v527 = vld [vmem:[#allocation2 + $0x3f0] sm:$0xff]
    %v528 = vld [vmem:[#allocation2 + $0x3f8] sm:$0xff]
    %v529 = vld [vmem:[#allocation2 + $0x400] sm:$0xff]
    %v530 = vld [vmem:[#allocation2 + $0x408] sm:$0xff]
    %v531 = vld [vmem:[#allocation2 + $0x410] sm:$0xff]
    %v532 = vld [vmem:[#allocation2 + $0x418] sm:$0xff]
    %v533 = vld [vmem:[#allocation2 + $0x420] sm:$0xff]
    %v534 = vld [vmem:[#allocation2 + $0x428] sm:$0xff]
    %v535 = vld [vmem:[#allocation2 + $0x430] sm:$0xff]
    %v536 = vld [vmem:[#allocation2 + $0x438] sm:$0xff]
    %v537 = vld [vmem:[#allocation2 + $0x440] sm:$0xff]
    %v538 = vld [vmem:[#allocation2 + $0x448] sm:$0xff]
    %v539 = vld [vmem:[#allocation2 + $0x450] sm:$0xff]
    %v540 = vld [vmem:[#allocation2 + $0x458] sm:$0xff]
    %v541 = vld [vmem:[#allocation2 + $0x460] sm:$0xff]
    %v542 = vld [vmem:[#allocation2 + $0x468] sm:$0xff]
    %v543 = vld [vmem:[#allocation2 + $0x470] sm:$0xff]
    %v544 = vld [vmem:[#allocation2 + $0x478] sm:$0xff]
    %v545 = vld [vmem:[#allocation2 + $0x480] sm:$0xff]
    %v546 = vld [vmem:[#allocation2 + $0x488] sm:$0xff]
    %v547 = vld [vmem:[#allocation2 + $0x490] sm:$0xff]
    %v548 = vld [vmem:[#allocation2 + $0x498] sm:$0xff]
    %v549 = vld [vmem:[#allocation2 + $0x4a0] sm:$0xff]
    %v550 = vld [vmem:[#allocation2 + $0x4a8] sm:$0xff]
    %v551 = vld [vmem:[#allocation2 + $0x4b0] sm:$0xff]
    %v552 = vld [vmem:[#allocation2 + $0x4b8] sm:$0xff]
    %v553 = vld [vmem:[#allocation2 + $0x4c0] sm:$0xff]
    %v554 = vld [vmem:[#allocation2 + $0x4c8] sm:$0xff]
    %v555 = vld [vmem:[#allocation2 + $0x4d0] sm:$0xff]
    %v556 = vld [vmem:[#allocation2 + $0x4d8] sm:$0xff]
    %v557 = vld [vmem:[#allocation2 + $0x4e0] sm:$0xff]
    %v558 = vld [vmem:[#allocation2 + $0x4e8] sm:$0xff]
    %v559 = vld [vmem:[#allocation2 + $0x4f0] sm:$0xff]
    %v560 = vld [vmem:[#allocation2 + $0x4f8] sm:$0xff]
    %v561 = vld [vmem:[#allocation2 + $0x500] sm:$0xff]
    %v562 = vld [vmem:[#allocation2 + $0x508] sm:$0xff]
    %v563 = vld [vmem:[#allocation2 + $0x510] sm:$0xff]
    %v564 = vld [vmem:[#allocation2 + $0x518] sm:$0xff]
    %v565 = vld [vmem:[#allocation2 + $0x520] sm:$0xff]
    %v566 = vld [vmem:[#allocation2 + $0x528] sm:$0xff]
    %v567 = vld [vmem:[#allocation2 + $0x530] sm:$0xff]
    %v568 = vld [vmem:[#allocation2 + $0x538] sm:$0xff]
    %v569 = vld [vmem:[#allocation2 + $0x540] sm:$0xff]
    %v570 = vld [vmem:[#allocation2 + $0x548] sm:$0xff]
    %v571 = vld [vmem:[#allocation2 + $0x550] sm:$0xff]
    %v572 = vld [vmem:[#allocation2 + $0x558] sm:$0xff]
    %v573 = vld [vmem:[#allocation2 + $0x560] sm:$0xff]
    %v574 = vld [vmem:[#allocation2 + $0x568] sm:$0xff]
    %v575 = vld [vmem:[#allocation2 + $0x570] sm:$0xff]
    %v576 = vld [vmem:[#allocation2 + $0x578] sm:$0xff]
    %v577 = vld [vmem:[#allocation2 + $0x580] sm:$0xff]
    %v578 = vld [vmem:[#allocation2 + $0x588] sm:$0xff]
    %v579 = vld [vmem:[#allocation2 + $0x590] sm:$0xff]
    %v580 = vld [vmem:[#allocation2 + $0x598] sm:$0xff]
    %v581 = vld [vmem:[#allocation2 + $0x5a0] sm:$0xff]
    %v582 = vld [vmem:[#allocation2 + $0x5a8] sm:$0xff]
    %v583 = vld [vmem:[#allocation2 + $0x5b0] sm:$0xff]
    %v584 = vld [vmem:[#allocation2 + $0x5b8] sm:$0xff]
    %v585 = vld [vmem:[#allocation2 + $0x5c0] sm:$0xff]
    %v586 = vld [vmem:[#allocation2 + $0x5c8] sm:$0xff]
    %v587 = vld [vmem:[#allocation2 + $0x5d0] sm:$0xff]
    %v588 = vld [vmem:[#allocation2 + $0x5d8] sm:$0xff]
    %v589 = vld [vmem:[#allocation2 + $0x5e0] sm:$0xff]
    %v590 = vld [vmem:[#allocation2 + $0x5e8] sm:$0xff]
    %v591 = vld [vmem:[#allocation2 + $0x5f0] sm:$0xff]
    %v592 = vld [vmem:[#allocation2 + $0x5f8] sm:$0xff]
    %s593 = scalar_lea.vmem %s3, 1
    %v594 = vld [vmem:[%s593] ss:$2 sm:$0x3f]
    %v596 = vlaneseq
    %v597 = vshrl.u32 %v596, 7
    %v598 = vsub.s32 0, %v597
    %v599 = vrot.slane %v594, %v598
    %v600 = vlaneseq
    %v601 = vshrl.u32 %v600, 7
    %v602 = vsub.s32 1, %v601
    %v603 = vrot.slane %v594, %v602
    %v604 = vlaneseq
    %v605 = vshrl.u32 %v604, 7
    %v606 = vsub.s32 2, %v605
    %v607 = vrot.slane %v594, %v606
    %v608 = vlaneseq
    %v609 = vshrl.u32 %v608, 7
    %v610 = vsub.s32 3, %v609
    %v611 = vrot.slane %v594, %v610
    %v612 = vlaneseq
    %v613 = vshrl.u32 %v612, 7
    %v614 = vsub.s32 4, %v613
    %v615 = vrot.slane %v594, %v614
    %v616 = vlaneseq
    %v617 = vshrl.u32 %v616, 7
    %v618 = vsub.s32 5, %v617
    %v619 = vrot.slane %v594, %v618
    %626 = vmatprep.subr.mxu0 %v492
    %627 = vmatpush1.msra.mxu0 %v491
    %628 = vmatprep.subr.mxu0 %v486
    %629 = vmatpush1.msra.mxu0 %v485
    %630 = vmatprep.subr.mxu0 %v480
    %631 = vmatpush1.msra.mxu0 %v479
    %632 = vmatprep.subr.mxu0 %v474
    %633 = vmatpush1.msra.mxu0 %v473
    %634 = vmatprep.subr.mxu0 %v468
    %635 = vmatpush1.msra.mxu0 %v467
    %636 = vmatprep.subr.mxu0 %v462
    %637 = vmatpush1.msra.mxu0 %v461
    %638 = vmatprep.subr.mxu0 %v456
    %639 = vmatpush1.msra.mxu0 %v455
    %640 = vmatprep.subr.mxu0 %v450
    %641 = vmatpush1.msra.mxu0 %v449
    %642 = vmatprep.subr.mxu0 %v444
    %643 = vmatpush1.msra.mxu0 %v443
    %644 = vmatprep.subr.mxu0 %v438
    %645 = vmatpush1.msra.mxu0 %v437
    %646 = vmatprep.subr.mxu0 %v432
    %647 = vmatpush1.msra.mxu0 %v431
    %648 = vmatprep.subr.mxu0 %v426
    %649 = vmatpush1.msra.mxu0 %v425
    %650 = vmatprep.subr.mxu0 %v420
    %651 = vmatpush1.msra.mxu0 %v419
    %652 = vmatprep.subr.mxu0 %v414
    %653 = vmatpush1.msra.mxu0 %v413
    %654 = vmatprep.subr.mxu0 %v408
    %655 = vmatpush1.msra.mxu0 %v407
    %656 = vmatprep.subr.mxu0 %v402
    %657 = vmatpush1.msra.mxu0 %v401
    %658 = vmatprep.subr.mxu0 %v588
    %659 = vmatpush2.msra.mxu0 %v587
    %660 = vmatprep.subr.mxu0 %v582
    %661 = vmatpush2.msra.mxu0 %v581
    %662 = vmatprep.subr.mxu0 %v576
    %663 = vmatpush2.msra.mxu0 %v575
    %664 = vmatprep.subr.mxu0 %v570
    %665 = vmatpush2.msra.mxu0 %v569
    %666 = vmatprep.subr.mxu0 %v564
    %667 = vmatpush2.msra.mxu0 %v563
    %668 = vmatprep.subr.mxu0 %v558
    %669 = vmatpush2.msra.mxu0 %v557
    %670 = vmatprep.subr.mxu0 %v552
    %671 = vmatpush2.msra.mxu0 %v551
    %672 = vmatprep.subr.mxu0 %v546
    %673 = vmatpush2.msra.mxu0 %v545
    %674 = vmatprep.subr.mxu0 %v540
    %675 = vmatpush2.msra.mxu0 %v539
    %676 = vmatprep.subr.mxu0 %v534
    %677 = vmatpush2.msra.mxu0 %v533
    %678 = vmatprep.subr.mxu0 %v528
    %679 = vmatpush2.msra.mxu0 %v527
    %680 = vmatprep.subr.mxu0 %v522
    %681 = vmatpush2.msra.mxu0 %v521
    %682 = vmatprep.subr.mxu0 %v516
    %683 = vmatpush2.msra.mxu0 %v515
    %684 = vmatprep.subr.mxu0 %v510
    %685 = vmatpush2.msra.mxu0 %v509
    %686 = vmatprep.subr.mxu0 %v504
    %687 = vmatpush2.msra.mxu0 %v503
    %688 = vmatprep.subr.mxu0 %v498
    %689 = vmatpush2.msra.mxu0 %v497
    %690 = vmatprep.mubr.f32.mxu0 0.0
    %691 = vmatmul.mubr.f32.gmra.mxu0 0.0
    %v692 = vpop.f32.mrf.mxu0
    %v693 = vadd.f32 %v599, %v692
    %v694 = vpop.f32.mrf.mxu0
    %v695 = vadd.f32 %v603, %v694
    %696 = vdwg.mxu0
    %697 = vmatprep.subr.mxu0 %v494
    %698 = vmatpush1.msra.mxu0 %v493
    %699 = vmatprep.subr.mxu0 %v488
    %700 = vmatpush1.msra.mxu0 %v487
    %701 = vmatprep.subr.mxu0 %v482
    %702 = vmatpush1.msra.mxu0 %v481
    %703 = vmatprep.subr.mxu0 %v476
    %704 = vmatpush1.msra.mxu0 %v475
    %705 = vmatprep.subr.mxu0 %v470
    %706 = vmatpush1.msra.mxu0 %v469
    %707 = vmatprep.subr.mxu0 %v464
    %708 = vmatpush1.msra.mxu0 %v463
    %709 = vmatprep.subr.mxu0 %v458
    %710 = vmatpush1.msra.mxu0 %v457
    %711 = vmatprep.subr.mxu0 %v452
    %712 = vmatpush1.msra.mxu0 %v451
    %713 = vmatprep.subr.mxu0 %v446
    %714 = vmatpush1.msra.mxu0 %v445
    %715 = vmatprep.subr.mxu0 %v440
    %716 = vmatpush1.msra.mxu0 %v439
    %717 = vmatprep.subr.mxu0 %v434
    %718 = vmatpush1.msra.mxu0 %v433
    %719 = vmatprep.subr.mxu0 %v428
    %720 = vmatpush1.msra.mxu0 %v427
    %721 = vmatprep.subr.mxu0 %v422
    %722 = vmatpush1.msra.mxu0 %v421
    %723 = vmatprep.subr.mxu0 %v416
    %724 = vmatpush1.msra.mxu0 %v415
    %725 = vmatprep.subr.mxu0 %v410
    %726 = vmatpush1.msra.mxu0 %v409
    %727 = vmatprep.subr.mxu0 %v404
    %728 = vmatpush1.msra.mxu0 %v403
    %729 = vmatprep.subr.mxu0 %v590
    %730 = vmatpush2.msra.mxu0 %v589
    %731 = vmatprep.subr.mxu0 %v584
    %732 = vmatpush2.msra.mxu0 %v583
    %733 = vmatprep.subr.mxu0 %v578
    %734 = vmatpush2.msra.mxu0 %v577
    %735 = vmatprep.subr.mxu0 %v572
    %736 = vmatpush2.msra.mxu0 %v571
    %737 = vmatprep.subr.mxu0 %v566
    %738 = vmatpush2.msra.mxu0 %v565
    %739 = vmatprep.subr.mxu0 %v560
    %740 = vmatpush2.msra.mxu0 %v559
    %741 = vmatprep.subr.mxu0 %v554
    %742 = vmatpush2.msra.mxu0 %v553
    %743 = vmatprep.subr.mxu0 %v548
    %744 = vmatpush2.msra.mxu0 %v547
    %745 = vmatprep.subr.mxu0 %v542
    %746 = vmatpush2.msra.mxu0 %v541
    %747 = vmatprep.subr.mxu0 %v536
    %748 = vmatpush2.msra.mxu0 %v535
    %749 = vmatprep.subr.mxu0 %v530
    %750 = vmatpush2.msra.mxu0 %v529
    %751 = vmatprep.subr.mxu0 %v524
    %752 = vmatpush2.msra.mxu0 %v523
    %753 = vmatprep.subr.mxu0 %v518
    %754 = vmatpush2.msra.mxu0 %v517
    %755 = vmatprep.subr.mxu0 %v512
    %756 = vmatpush2.msra.mxu0 %v511
    %757 = vmatprep.subr.mxu0 %v506
    %758 = vmatpush2.msra.mxu0 %v505
    %759 = vmatprep.subr.mxu0 %v500
    %760 = vmatpush2.msra.mxu0 %v499
    %761 = vmatprep.mubr.f32.mxu0 0.0
    %762 = vmatmul.mubr.f32.gmra.mxu0 0.0
    %v763 = vpop.f32.mrf.mxu0
    %v764 = vadd.f32 %v607, %v763
    %v765 = vpop.f32.mrf.mxu0
    %v766 = vadd.f32 %v611, %v765
    %767 = vdwg.mxu0
    %768 = vmatprep.subr.mxu0 %v496
    %769 = vmatpush1.msra.mxu0 %v495
    %770 = vmatprep.subr.mxu0 %v490
    %771 = vmatpush1.msra.mxu0 %v489
    %772 = vmatprep.subr.mxu0 %v484
    %773 = vmatpush1.msra.mxu0 %v483
    %774 = vmatprep.subr.mxu0 %v478
    %775 = vmatpush1.msra.mxu0 %v477
    %776 = vmatprep.subr.mxu0 %v472
    %777 = vmatpush1.msra.mxu0 %v471
    %778 = vmatprep.subr.mxu0 %v466
    %779 = vmatpush1.msra.mxu0 %v465
    %780 = vmatprep.subr.mxu0 %v460
    %781 = vmatpush1.msra.mxu0 %v459
    %782 = vmatprep.subr.mxu0 %v454
    %783 = vmatpush1.msra.mxu0 %v453
    %784 = vmatprep.subr.mxu0 %v448
    %785 = vmatpush1.msra.mxu0 %v447
    %786 = vmatprep.subr.mxu0 %v442
    %787 = vmatpush1.msra.mxu0 %v441
    %788 = vmatprep.subr.mxu0 %v436
    %789 = vmatpush1.msra.mxu0 %v435
    %790 = vmatprep.subr.mxu0 %v430
    %791 = vmatpush1.msra.mxu0 %v429
    %792 = vmatprep.subr.mxu0 %v424
    %793 = vmatpush1.msra.mxu0 %v423
    %794 = vmatprep.subr.mxu0 %v418
    %795 = vmatpush1.msra.mxu0 %v417
    %796 = vmatprep.subr.mxu0 %v412
    %797 = vmatpush1.msra.mxu0 %v411
    %798 = vmatprep.subr.mxu0 %v406
    %799 = vmatpush1.msra.mxu0 %v405
    %800 = vmatprep.subr.mxu0 %v592
    %801 = vmatpush2.msra.mxu0 %v591
    %802 = vmatprep.subr.mxu0 %v586
    %803 = vmatpush2.msra.mxu0 %v585
    %804 = vmatprep.subr.mxu0 %v580
    %805 = vmatpush2.msra.mxu0 %v579
    %806 = vmatprep.subr.mxu0 %v574
    %807 = vmatpush2.msra.mxu0 %v573
    %808 = vmatprep.subr.mxu0 %v568
    %809 = vmatpush2.msra.mxu0 %v567
    %810 = vmatprep.subr.mxu0 %v562
    %811 = vmatpush2.msra.mxu0 %v561
    %812 = vmatprep.subr.mxu0 %v556
    %813 = vmatpush2.msra.mxu0 %v555
    %814 = vmatprep.subr.mxu0 %v550
    %815 = vmatpush2.msra.mxu0 %v549
    %816 = vmatprep.subr.mxu0 %v544
    %817 = vmatpush2.msra.mxu0 %v543
    %818 = vmatprep.subr.mxu0 %v538
    %819 = vmatpush2.msra.mxu0 %v537
    %820 = vmatprep.subr.mxu0 %v532
    %821 = vmatpush2.msra.mxu0 %v531
    %822 = vmatprep.subr.mxu0 %v526
    %823 = vmatpush2.msra.mxu0 %v525
    %824 = vmatprep.subr.mxu0 %v520
    %825 = vmatpush2.msra.mxu0 %v519
    %826 = vmatprep.subr.mxu0 %v514
    %827 = vmatpush2.msra.mxu0 %v513
    %828 = vmatprep.subr.mxu0 %v508
    %829 = vmatpush2.msra.mxu0 %v507
    %830 = vmatprep.subr.mxu0 %v502
    %831 = vmatpush2.msra.mxu0 %v501
    %832 = vmatprep.mubr.f32.mxu0 0.0
    %833 = vmatmul.mubr.f32.gmra.mxu0 0.0
    %v834 = vpop.f32.mrf.mxu0
    %v835 = vadd.f32 %v615, %v834
    %v836 = vpop.f32.mrf.mxu0
    %v837 = vadd.f32 %v619, %v836
    %838 = vdwg.mxu0
    %v839 = vadd.f32 %v255, %v693
    %v840 = vadd.f32 %v257, %v695
    %v841 = vxor.u32 %v839, 2147483648
    %v842 = vxor.u32 %v840, 2147483648
    %v843 = vmul.f32 %v841, 1.442695
    %v844 = vpow.pop %v843
    %v845 = vmul.f32 %v842, 1.442695
    %v846 = vpow.pop %v845
    %v847 = vadd.f32 %v844, 1.0
    %v848 = vadd.f32 %v846, 1.0
    %v849 = vrcp.pop %v847
    %v850 = vmul.f32 1.0, %v849
    %v851 = vrcp.pop %v848
    %v852 = vmul.f32 1.0, %v851
    %v853 = vadd.f32 %v326, %v764
    %v854 = vadd.f32 %v328, %v766
    %v855 = vxor.u32 %v853, 2147483648
    %v856 = vxor.u32 %v854, 2147483648
    %v857 = vmul.f32 %v855, 1.442695
    %v858 = vpow.pop %v857
    %v859 = vmul.f32 %v856, 1.442695
    %v860 = vpow.pop %v859
    %v861 = vadd.f32 %v858, 1.0
    %v862 = vadd.f32 %v860, 1.0
    %v863 = vrcp.pop %v861
    %v864 = vmul.f32 1.0, %v863
    %v865 = vrcp.pop %v862
    %v866 = vmul.f32 1.0, %v865
    %v867 = vmul.f32 %v850, %v835
    %v868 = vmul.f32 %v852, %v837
    %v869 = vadd.f32 %v397, %v867
    %v870 = vadd.f32 %v399, %v868
    %v871 = vtanh.pop %v869
    %v872 = vtanh.pop %v870
    %v873 = vsub.f32 1.0, %v864
    %v874 = vsub.f32 1.0, %v866
    %v875 = vmul.f32 %v873, %v871
    %v876 = vmul.f32 %v874, %v872
    %v877 = vmul.f32 %v864, 0.0
    %v878 = vmul.f32 %v866, 0.0
    %v879 = vadd.f32 %v875, %v877
    %v880 = vadd.f32 %v876, %v878
    %881 = vmatprep.subr.mxu0 %v492
    %882 = vmatpush1.msra.mxu0 %v491
    %883 = vmatprep.subr.mxu0 %v486
    %884 = vmatpush1.msra.mxu0 %v485
    %885 = vmatprep.subr.mxu0 %v480
    %886 = vmatpush1.msra.mxu0 %v479
    %887 = vmatprep.subr.mxu0 %v474
    %888 = vmatpush1.msra.mxu0 %v473
    %889 = vmatprep.subr.mxu0 %v468
    %890 = vmatpush1.msra.mxu0 %v467
    %891 = vmatprep.subr.mxu0 %v462
    %892 = vmatpush1.msra.mxu0 %v461
    %893 = vmatprep.subr.mxu0 %v456
    %894 = vmatpush1.msra.mxu0 %v455
    %895 = vmatprep.subr.mxu0 %v450
    %896 = vmatpush1.msra.mxu0 %v449
    %897 = vmatprep.subr.mxu0 %v444
    %898 = vmatpush1.msra.mxu0 %v443
    %899 = vmatprep.subr.mxu0 %v438
    %900 = vmatpush1.msra.mxu0 %v437
    %901 = vmatprep.subr.mxu0 %v432
    %902 = vmatpush1.msra.mxu0 %v431
    %903 = vmatprep.subr.mxu0 %v426
    %904 = vmatpush1.msra.mxu0 %v425
    %905 = vmatprep.subr.mxu0 %v420
    %906 = vmatpush1.msra.mxu0 %v419
    %907 = vmatprep.subr.mxu0 %v414
    %908 = vmatpush1.msra.mxu0 %v413
    %909 = vmatprep.subr.mxu0 %v408
    %910 = vmatpush1.msra.mxu0 %v407
    %911 = vmatprep.subr.mxu0 %v402
    %912 = vmatpush1.msra.mxu0 %v401
    %913 = vmatprep.subr.mxu0 %v588
    %914 = vmatpush2.msra.mxu0 %v587
    %915 = vmatprep.subr.mxu0 %v582
    %916 = vmatpush2.msra.mxu0 %v581
    %917 = vmatprep.subr.mxu0 %v576
    %918 = vmatpush2.msra.mxu0 %v575
    %919 = vmatprep.subr.mxu0 %v570
    %920 = vmatpush2.msra.mxu0 %v569
    %921 = vmatprep.subr.mxu0 %v564
    %922 = vmatpush2.msra.mxu0 %v563
    %923 = vmatprep.subr.mxu0 %v558
    %924 = vmatpush2.msra.mxu0 %v557
    %925 = vmatprep.subr.mxu0 %v552
    %926 = vmatpush2.msra.mxu0 %v551
    %927 = vmatprep.subr.mxu0 %v546
    %928 = vmatpush2.msra.mxu0 %v545
    %929 = vmatprep.subr.mxu0 %v540
    %930 = vmatpush2.msra.mxu0 %v539
    %931 = vmatprep.subr.mxu0 %v534
    %932 = vmatpush2.msra.mxu0 %v533
    %933 = vmatprep.subr.mxu0 %v528
    %934 = vmatpush2.msra.mxu0 %v527
    %935 = vmatprep.subr.mxu0 %v522
    %936 = vmatpush2.msra.mxu0 %v521
    %937 = vmatprep.subr.mxu0 %v516
    %938 = vmatpush2.msra.mxu0 %v515
    %939 = vmatprep.subr.mxu0 %v510
    %940 = vmatpush2.msra.mxu0 %v509
    %941 = vmatprep.subr.mxu0 %v504
    %942 = vmatpush2.msra.mxu0 %v503
    %943 = vmatprep.subr.mxu0 %v498
    %944 = vmatpush2.msra.mxu0 %v497
    %945 = vmatprep.mubr.f32.mxu0 %v880
    %946 = vmatmul.mubr.f32.gmra.mxu0 %v879
    %v947 = vpop.f32.mrf.mxu0
    %v948 = vadd.f32 %v599, %v947
    %v949 = vpop.f32.mrf.mxu0
    %v950 = vadd.f32 %v603, %v949
    %951 = vdwg.mxu0
    %952 = vmatprep.subr.mxu0 %v494
    %953 = vmatpush1.msra.mxu0 %v493
    %954 = vmatprep.subr.mxu0 %v488
    %955 = vmatpush1.msra.mxu0 %v487
    %956 = vmatprep.subr.mxu0 %v482
    %957 = vmatpush1.msra.mxu0 %v481
    %958 = vmatprep.subr.mxu0 %v476
    %959 = vmatpush1.msra.mxu0 %v475
    %960 = vmatprep.subr.mxu0 %v470
    %961 = vmatpush1.msra.mxu0 %v469
    %962 = vmatprep.subr.mxu0 %v464
    %963 = vmatpush1.msra.mxu0 %v463
    %964 = vmatprep.subr.mxu0 %v458
    %965 = vmatpush1.msra.mxu0 %v457
    %966 = vmatprep.subr.mxu0 %v452
    %967 = vmatpush1.msra.mxu0 %v451
    %968 = vmatprep.subr.mxu0 %v446
    %969 = vmatpush1.msra.mxu0 %v445
    %970 = vmatprep.subr.mxu0 %v440
    %971 = vmatpush1.msra.mxu0 %v439
    %972 = vmatprep.subr.mxu0 %v434
    %973 = vmatpush1.msra.mxu0 %v433
    %974 = vmatprep.subr.mxu0 %v428
    %975 = vmatpush1.msra.mxu0 %v427
    %976 = vmatprep.subr.mxu0 %v422
    %977 = vmatpush1.msra.mxu0 %v421
    %978 = vmatprep.subr.mxu0 %v416
    %979 = vmatpush1.msra.mxu0 %v415
    %980 = vmatprep.subr.mxu0 %v410
    %981 = vmatpush1.msra.mxu0 %v409
    %982 = vmatprep.subr.mxu0 %v404
    %983 = vmatpush1.msra.mxu0 %v403
    %984 = vmatprep.subr.mxu0 %v590
    %985 = vmatpush2.msra.mxu0 %v589
    %986 = vmatprep.subr.mxu0 %v584
    %987 = vmatpush2.msra.mxu0 %v583
    %988 = vmatprep.subr.mxu0 %v578
    %989 = vmatpush2.msra.mxu0 %v577
    %990 = vmatprep.subr.mxu0 %v572
    %991 = vmatpush2.msra.mxu0 %v571
    %992 = vmatprep.subr.mxu0 %v566
    %993 = vmatpush2.msra.mxu0 %v565
    %994 = vmatprep.subr.mxu0 %v560
    %995 = vmatpush2.msra.mxu0 %v559
    %996 = vmatprep.subr.mxu0 %v554
    %997 = vmatpush2.msra.mxu0 %v553
    %998 = vmatprep.subr.mxu0 %v548
    %999 = vmatpush2.msra.mxu0 %v547
    %1000 = vmatprep.subr.mxu0 %v542
    %1001 = vmatpush2.msra.mxu0 %v541
    %1002 = vmatprep.subr.mxu0 %v536
    %1003 = vmatpush2.msra.mxu0 %v535
    %1004 = vmatprep.subr.mxu0 %v530
    %1005 = vmatpush2.msra.mxu0 %v529
    %1006 = vmatprep.subr.mxu0 %v524
    %1007 = vmatpush2.msra.mxu0 %v523
    %1008 = vmatprep.subr.mxu0 %v518
    %1009 = vmatpush2.msra.mxu0 %v517
    %1010 = vmatprep.subr.mxu0 %v512
    %1011 = vmatpush2.msra.mxu0 %v511
    %1012 = vmatprep.subr.mxu0 %v506
    %1013 = vmatpush2.msra.mxu0 %v505
    %1014 = vmatprep.subr.mxu0 %v500
    %1015 = vmatpush2.msra.mxu0 %v499
    %1016 = vmatprep.mubr.f32.mxu0 %v880
    %1017 = vmatmul.mubr.f32.gmra.mxu0 %v879
    %v1018 = vpop.f32.mrf.mxu0
    %v1019 = vadd.f32 %v607, %v1018
    %v1020 = vpop.f32.mrf.mxu0
    %v1021 = vadd.f32 %v611, %v1020
    %1022 = vdwg.mxu0
    %1023 = vmatprep.subr.mxu0 %v496
    %1024 = vmatpush1.msra.mxu0 %v495
    %1025 = vmatprep.subr.mxu0 %v490
    %1026 = vmatpush1.msra.mxu0 %v489
    %1027 = vmatprep.subr.mxu0 %v484
    %1028 = vmatpush1.msra.mxu0 %v483
    %1029 = vmatprep.subr.mxu0 %v478
    %1030 = vmatpush1.msra.mxu0 %v477
    %1031 = vmatprep.subr.mxu0 %v472
    %1032 = vmatpush1.msra.mxu0 %v471
    %1033 = vmatprep.subr.mxu0 %v466
    %1034 = vmatpush1.msra.mxu0 %v465
    %1035 = vmatprep.subr.mxu0 %v460
    %1036 = vmatpush1.msra.mxu0 %v459
    %1037 = vmatprep.subr.mxu0 %v454
    %1038 = vmatpush1.msra.mxu0 %v453
    %1039 = vmatprep.subr.mxu0 %v448
    %1040 = vmatpush1.msra.mxu0 %v447
    %1041 = vmatprep.subr.mxu0 %v442
    %1042 = vmatpush1.msra.mxu0 %v441
    %1043 = vmatprep.subr.mxu0 %v436
    %1044 = vmatpush1.msra.mxu0 %v435
    %1045 = vmatprep.subr.mxu0 %v430
    %1046 = vmatpush1.msra.mxu0 %v429
    %1047 = vmatprep.subr.mxu0 %v424
    %1048 = vmatpush1.msra.mxu0 %v423
    %1049 = vmatprep.subr.mxu0 %v418
    %1050 = vmatpush1.msra.mxu0 %v417
    %1051 = vmatprep.subr.mxu0 %v412
    %1052 = vmatpush1.msra.mxu0 %v411
    %1053 = vmatprep.subr.mxu0 %v406
    %1054 = vmatpush1.msra.mxu0 %v405
    %1055 = vmatprep.subr.mxu0 %v592
    %1056 = vmatpush2.msra.mxu0 %v591
    %1057 = vmatprep.subr.mxu0 %v586
    %1058 = vmatpush2.msra.mxu0 %v585
    %1059 = vmatprep.subr.mxu0 %v580
    %1060 = vmatpush2.msra.mxu0 %v579
    %1061 = vmatprep.subr.mxu0 %v574
    %1062 = vmatpush2.msra.mxu0 %v573
    %1063 = vmatprep.subr.mxu0 %v568
    %1064 = vmatpush2.msra.mxu0 %v567
    %1065 = vmatprep.subr.mxu0 %v562
    %1066 = vmatpush2.msra.mxu0 %v561
    %1067 = vmatprep.subr.mxu0 %v556
    %1068 = vmatpush2.msra.mxu0 %v555
    %1069 = vmatprep.subr.mxu0 %v550
    %1070 = vmatpush2.msra.mxu0 %v549
    %1071 = vmatprep.subr.mxu0 %v544
    %1072 = vmatpush2.msra.mxu0 %v543
    %1073 = vmatprep.subr.mxu0 %v538
    %1074 = vmatpush2.msra.mxu0 %v537
    %1075 = vmatprep.subr.mxu0 %v532
    %1076 = vmatpush2.msra.mxu0 %v531
    %1077 = vmatprep.subr.mxu0 %v526
    %1078 = vmatpush2.msra.mxu0 %v525
    %1079 = vmatprep.subr.mxu0 %v520
    %1080 = vmatpush2.msra.mxu0 %v519
    %1081 = vmatprep.subr.mxu0 %v514
    %1082 = vmatpush2.msra.mxu0 %v513
    %1083 = vmatprep.subr.mxu0 %v508
    %1084 = vmatpush2.msra.mxu0 %v507
    %1085 = vmatprep.subr.mxu0 %v502
    %1086 = vmatpush2.msra.mxu0 %v501
    %1087 = vmatprep.mubr.f32.mxu0 %v880
    %1088 = vmatmul.mubr.f32.gmra.mxu0 %v879
    %v1089 = vpop.f32.mrf.mxu0
    %v1090 = vadd.f32 %v615, %v1089
    %v1091 = vpop.f32.mrf.mxu0
    %v1092 = vadd.f32 %v619, %v1091
    %1093 = vdwg.mxu0
    %v1096 = vrot.slane %v948, 7
    %v1097 = vrot.slane %v950, 7
    %v1100 = vadd.f32 %v255, %v1096
    %v1101 = vadd.f32 %v257, %v1097
    %v1102 = vxor.u32 %v1100, 2147483648
    %v1103 = vxor.u32 %v1101, 2147483648
    %v1104 = vmul.f32 %v1102, 1.442695
    %v1105 = vpow.pop %v1104
    %v1106 = vmul.f32 %v1103, 1.442695
    %v1107 = vpow.pop %v1106
    %v1108 = vadd.f32 %v1105, 1.0
    %v1109 = vadd.f32 %v1107, 1.0
    %v1110 = vrcp.pop %v1108
    %v1111 = vmul.f32 1.0, %v1110
    %v1112 = vrcp.pop %v1109
    %v1113 = vmul.f32 1.0, %v1112
    %v1116 = vrot.slane %v1019, 7
    %v1117 = vrot.slane %v1021, 7
    %v1120 = vadd.f32 %v326, %v1116
    %v1121 = vadd.f32 %v328, %v1117
    %v1122 = vxor.u32 %v1120, 2147483648
    %v1123 = vxor.u32 %v1121, 2147483648
    %v1124 = vmul.f32 %v1122, 1.442695
    %v1125 = vpow.pop %v1124
    %v1126 = vmul.f32 %v1123, 1.442695
    %v1127 = vpow.pop %v1126
    %v1128 = vadd.f32 %v1125, 1.0
    %v1129 = vadd.f32 %v1127, 1.0
    %v1130 = vrcp.pop %v1128
    %v1131 = vmul.f32 1.0, %v1130
    %v1132 = vrcp.pop %v1129
    %v1133 = vmul.f32 1.0, %v1132
    %v1136 = vrot.slane %v1090, 7
    %v1137 = vrot.slane %v1092, 7
    %v1140 = vmul.f32 %v1111, %v1136
    %v1141 = vmul.f32 %v1113, %v1137
    %v1142 = vadd.f32 %v397, %v1140
    %v1143 = vadd.f32 %v399, %v1141
    %v1144 = vtanh.pop %v1142
    %v1145 = vtanh.pop %v1143
    %v1146 = vsub.f32 1.0, %v1131
    %v1147 = vsub.f32 1.0, %v1133
    %v1148 = vmul.f32 %v1146, %v1144
    %v1149 = vmul.f32 %v1147, %v1145
    %v1152 = vrot.slane %v879, 7
    %v1153 = vrot.slane %v880, 7
    %v1156 = vmul.f32 %v1131, %v1152
    %v1157 = vmul.f32 %v1133, %v1153
    %v1158 = vadd.f32 %v1148, %v1156
    %v1159 = vadd.f32 %v1149, %v1157
    %vm1160 = vcmask 1040384
    %v1161 = vsel %vm1160, %v879, %v1158
    %v1162 = vsel %vm1160, %v880, %v1159
    %v1163 = vld [vmem:[%s5] sm:$0x1]
    %v1164 = vmax.f32 %v1161, 0.0
    %v1165 = vmax.f32 %v1162, 0.0
    %v1166 = vld [vmem:[%s4] sm:$0xff]
    %v1167 = vld [vmem:[%s4 + $0x8] sm:$0xff]
    %v1168 = vld [vmem:[%s4 + $0x10] sm:$0xff]
    %v1169 = vld [vmem:[%s4 + $0x18] sm:$0xff]
    %v1170 = vld [vmem:[%s4 + $0x20] sm:$0xff]
    %v1171 = vld [vmem:[%s4 + $0x28] sm:$0xff]
    %v1172 = vld [vmem:[%s4 + $0x30] sm:$0xff]
    %v1173 = vld [vmem:[%s4 + $0x38] sm:$0xff]
    %v1174 = vld [vmem:[%s4 + $0x40] sm:$0xff]
    %v1175 = vld [vmem:[%s4 + $0x48] sm:$0xff]
    %v1176 = vld [vmem:[%s4 + $0x50] sm:$0xff]
    %v1177 = vld [vmem:[%s4 + $0x58] sm:$0xff]
    %v1178 = vld [vmem:[%s4 + $0x60] sm:$0xff]
    %v1179 = vld [vmem:[%s4 + $0x68] sm:$0xff]
    %v1180 = vld [vmem:[%s4 + $0x70] sm:$0xff]
    %v1181 = vld [vmem:[%s4 + $0x78] sm:$0xff]
    %v1182 = vld [vmem:[%s4 + $0x80] sm:$0xff]
    %v1183 = vld [vmem:[%s4 + $0x88] sm:$0xff]
    %v1184 = vld [vmem:[%s4 + $0x90] sm:$0xff]
    %v1185 = vld [vmem:[%s4 + $0x98] sm:$0xff]
    %v1186 = vld [vmem:[%s4 + $0xa0] sm:$0xff]
    %v1187 = vld [vmem:[%s4 + $0xa8] sm:$0xff]
    %v1188 = vld [vmem:[%s4 + $0xb0] sm:$0xff]
    %v1189 = vld [vmem:[%s4 + $0xb8] sm:$0xff]
    %v1190 = vld [vmem:[%s4 + $0xc0] sm:$0xff]
    %v1191 = vld [vmem:[%s4 + $0xc8] sm:$0xff]
    %v1192 = vld [vmem:[%s4 + $0xd0] sm:$0xff]
    %v1193 = vld [vmem:[%s4 + $0xd8] sm:$0xff]
    %v1194 = vld [vmem:[%s4 + $0xe0] sm:$0xff]
    %v1195 = vld [vmem:[%s4 + $0xe8] sm:$0xff]
    %v1196 = vld [vmem:[%s4 + $0xf0] sm:$0xff]
    %v1197 = vld [vmem:[%s4 + $0xf8] sm:$0xff]
    %v1198 = vlaneseq
    %v1199 = vshrl.u32 %v1198, 7
    %v1200 = vsub.s32 0, %v1199
    %v1201 = vrot.slane %v1163, %v1200
    %1202 = vmatprep.subr.mxu0 0.0
    %1203 = vmatpush1.msra.mxu0 %v1181
    %1204 = vmatprep.subr.mxu0 0.0
    %1205 = vmatpush1.msra.mxu0 %v1180
    %1206 = vmatprep.subr.mxu0 0.0
    %1207 = vmatpush1.msra.mxu0 %v1179
    %1208 = vmatprep.subr.mxu0 0.0
    %1209 = vmatpush1.msra.mxu0 %v1178
    %1210 = vmatprep.subr.mxu0 0.0
    %1211 = vmatpush1.msra.mxu0 %v1177
    %1212 = vmatprep.subr.mxu0 0.0
    %1213 = vmatpush1.msra.mxu0 %v1176
    %1214 = vmatprep.subr.mxu0 0.0
    %1215 = vmatpush1.msra.mxu0 %v1175
    %1216 = vmatprep.subr.mxu0 0.0
    %1217 = vmatpush1.msra.mxu0 %v1174
    %1218 = vmatprep.subr.mxu0 0.0
    %1219 = vmatpush1.msra.mxu0 %v1173
    %1220 = vmatprep.subr.mxu0 0.0
    %1221 = vmatpush1.msra.mxu0 %v1172
    %1222 = vmatprep.subr.mxu0 0.0
    %1223 = vmatpush1.msra.mxu0 %v1171
    %1224 = vmatprep.subr.mxu0 0.0
    %1225 = vmatpush1.msra.mxu0 %v1170
    %1226 = vmatprep.subr.mxu0 0.0
    %1227 = vmatpush1.msra.mxu0 %v1169
    %1228 = vmatprep.subr.mxu0 0.0
    %1229 = vmatpush1.msra.mxu0 %v1168
    %1230 = vmatprep.subr.mxu0 0.0
    %1231 = vmatpush1.msra.mxu0 %v1167
    %1232 = vmatprep.subr.mxu0 0.0
    %1233 = vmatpush1.msra.mxu0 %v1166
    %1234 = vmatprep.subr.mxu0 0.0
    %1235 = vmatpush2.msra.mxu0 %v1197
    %1236 = vmatprep.subr.mxu0 0.0
    %1237 = vmatpush2.msra.mxu0 %v1196
    %1238 = vmatprep.subr.mxu0 0.0
    %1239 = vmatpush2.msra.mxu0 %v1195
    %1240 = vmatprep.subr.mxu0 0.0
    %1241 = vmatpush2.msra.mxu0 %v1194
    %1242 = vmatprep.subr.mxu0 0.0
    %1243 = vmatpush2.msra.mxu0 %v1193
    %1244 = vmatprep.subr.mxu0 0.0
    %1245 = vmatpush2.msra.mxu0 %v1192
    %1246 = vmatprep.subr.mxu0 0.0
    %1247 = vmatpush2.msra.mxu0 %v1191
    %1248 = vmatprep.subr.mxu0 0.0
    %1249 = vmatpush2.msra.mxu0 %v1190
    %1250 = vmatprep.subr.mxu0 0.0
    %1251 = vmatpush2.msra.mxu0 %v1189
    %1252 = vmatprep.subr.mxu0 0.0
    %1253 = vmatpush2.msra.mxu0 %v1188
    %1254 = vmatprep.subr.mxu0 0.0
    %1255 = vmatpush2.msra.mxu0 %v1187
    %1256 = vmatprep.subr.mxu0 0.0
    %1257 = vmatpush2.msra.mxu0 %v1186
    %1258 = vmatprep.subr.mxu0 0.0
    %1259 = vmatpush2.msra.mxu0 %v1185
    %1260 = vmatprep.subr.mxu0 0.0
    %1261 = vmatpush2.msra.mxu0 %v1184
    %1262 = vmatprep.subr.mxu0 0.0
    %1263 = vmatpush2.msra.mxu0 %v1183
    %1264 = vmatprep.subr.mxu0 0.0
    %1265 = vmatpush2.msra.mxu0 %v1182
    %1266 = vmatprep.mubr.f32.mxu0 %v1165
    %1267 = vmatmul.mubr.f32.gmra.mxu0 %v1164
    %v1268 = vpop.f32.mrf.mxu0
    %v1269 = vadd.f32 %v1201, %v1268
    %v1270 = vpop.f32.mrf.mxu0
    %1271 = vdwg.mxu0
    %v1272 = vld [vmem:[%s6] sm:$0xff]
    %v1273 = vld [vmem:[%s6 + $0x8] sm:$0xff]
    %v1275 = vrot.slane %v1269, 1
    %vm1276 = vcmask 261120
    %v1277 = vsel %vm1276, %v1275, 0
    %v1280 = vsel %vm1276, %v1272, 0
    %v1283 = vsel %vm1276, %v1273, 0
    %1285 = vmatprep.subr.mxu0 0.0
    %1286 = vmatpush1.xpose.msra.mxu0 0.0
    %1287 = vmatprep.subr.mxu0 0.0
    %1288 = vmatpush1.xpose.msra.mxu0 0.0
    %1289 = vmatprep.subr.mxu0 0.0
    %1290 = vmatpush1.xpose.msra.mxu0 0.0
    %1291 = vmatprep.subr.mxu0 0.0
    %1292 = vmatpush1.xpose.msra.mxu0 0.0
    %1293 = vmatprep.subr.mxu0 0.0
    %1294 = vmatpush1.xpose.msra.mxu0 0.0
    %1295 = vmatprep.subr.mxu0 0.0
    %1296 = vmatpush1.xpose.msra.mxu0 0.0
    %1297 = vmatprep.subr.mxu0 0.0
    %1298 = vmatpush1.xpose.msra.mxu0 0.0
    %1299 = vmatprep.subr.mxu0 0.0
    %1300 = vmatpush1.xpose.msra.mxu0 0.0
    %1301 = vmatprep.subr.mxu0 0.0
    %1302 = vmatpush1.xpose.msra.mxu0 0.0
    %1303 = vmatprep.subr.mxu0 0.0
    %1304 = vmatpush1.xpose.msra.mxu0 0.0
    %1305 = vmatprep.subr.mxu0 0.0
    %1306 = vmatpush1.xpose.msra.mxu0 0.0
    %1307 = vmatprep.subr.mxu0 0.0
    %1308 = vmatpush1.xpose.msra.mxu0 0.0
    %1309 = vmatprep.subr.mxu0 0.0
    %1310 = vmatpush1.xpose.msra.mxu0 0.0
    %1311 = vmatprep.subr.mxu0 0.0
    %1312 = vmatpush1.xpose.msra.mxu0 0.0
    %1313 = vmatprep.subr.mxu0 0.0
    %1314 = vmatpush1.xpose.msra.mxu0 %v1283
    %1315 = vmatprep.subr.mxu0 0.0
    %1316 = vmatpush1.xpose.msra.mxu0 %v1280
    %1317 = vmatprep.subr.mxu0 0.0
    %1318 = vmatpush2.xpose.msra.mxu0 0.0
    %1319 = vmatprep.subr.mxu0 0.0
    %1320 = vmatpush2.xpose.msra.mxu0 0.0
    %1321 = vmatprep.subr.mxu0 0.0
    %1322 = vmatpush2.xpose.msra.mxu0 0.0
    %1323 = vmatprep.subr.mxu0 0.0
    %1324 = vmatpush2.xpose.msra.mxu0 0.0
    %1325 = vmatprep.subr.mxu0 0.0
    %1326 = vmatpush2.xpose.msra.mxu0 0.0
    %1327 = vmatprep.subr.mxu0 0.0
    %1328 = vmatpush2.xpose.msra.mxu0 0.0
    %1329 = vmatprep.subr.mxu0 0.0
    %1330 = vmatpush2.xpose.msra.mxu0 0.0
    %1331 = vmatprep.subr.mxu0 0.0
    %1332 = vmatpush2.xpose.msra.mxu0 0.0
    %1333 = vmatprep.subr.mxu0 0.0
    %1334 = vmatpush2.xpose.msra.mxu0 0.0
    %1335 = vmatprep.subr.mxu0 0.0
    %1336 = vmatpush2.xpose.msra.mxu0 0.0
    %1337 = vmatprep.subr.mxu0 0.0
    %1338 = vmatpush2.xpose.msra.mxu0 0.0
    %1339 = vmatprep.subr.mxu0 0.0
    %1340 = vmatpush2.xpose.msra.mxu0 0.0
    %1341 = vmatprep.subr.mxu0 0.0
    %1342 = vmatpush2.xpose.msra.mxu0 0.0
    %1343 = vmatprep.subr.mxu0 0.0
    %1344 = vmatpush2.xpose.msra.mxu0 0.0
    %1345 = vmatprep.subr.mxu0 0.0
    %1346 = vmatpush2.xpose.msra.mxu0 0.0
    %1347 = vmatprep.subr.mxu0 0.0
    %1348 = vmatpush2.xpose.msra.mxu0 0.0
    %1349 = vmatprep.mubr.f32.mxu0 0.0
    %1350 = vmatmul.mubr.f32.gmra.mxu0 %v1277
    %v1351 = vpop.f32.mrf.mxu0
    %v1352 = vadd.f32 0.0, %v1351
    %v1353 = vpop.f32.mrf.mxu0
    %1354 = vdwg.mxu0
    %vm1355 = vcmask 122880
    %v1356 = vsel %vm1355, %v1352, -inf
    %1357 = vmax.xlane.f32.xlu0 %v1356
    %v1358 = vpop.xlane.xlu0 %1357
    %v1359 = vsub.f32 %v1352, %v1358
    %v1360 = vmul.f32 %v1359, 1.442695
    %v1361 = vpow.pop %v1360
    %v1362 = vsel %vm1355, %v1361, 0.0
    %1363 = vadd.xlane.f32.xlu0 %v1362
    %v1364 = vpop.xlane.xlu0 %1363
    %v1365 = vrcp.pop %v1364
    %v1366 = vmul.f32 %v1361, %v1365
    %vm1367 = vcmask 130048
    %v1369 = vsel %vm1367, %v1366, 0
    %1371 = vmatprep.subr.mxu0 0.0
    %1372 = vmatpush1.msra.mxu0 0.0
    %1373 = vmatprep.subr.mxu0 0.0
    %1374 = vmatpush1.msra.mxu0 0.0
    %1375 = vmatprep.subr.mxu0 0.0
    %1376 = vmatpush1.msra.mxu0 0.0
    %1377 = vmatprep.subr.mxu0 0.0
    %1378 = vmatpush1.msra.mxu0 0.0
    %1379 = vmatprep.subr.mxu0 0.0
    %1380 = vmatpush1.msra.mxu0 0.0
    %1381 = vmatprep.subr.mxu0 0.0
    %1382 = vmatpush1.msra.mxu0 0.0
    %1383 = vmatprep.subr.mxu0 0.0
    %1384 = vmatpush1.msra.mxu0 0.0
    %1385 = vmatprep.subr.mxu0 0.0
    %1386 = vmatpush1.msra.mxu0 0.0
    %1387 = vmatprep.subr.mxu0 0.0
    %1388 = vmatpush1.msra.mxu0 0.0
    %1389 = vmatprep.subr.mxu0 0.0
    %1390 = vmatpush1.msra.mxu0 0.0
    %1391 = vmatprep.subr.mxu0 0.0
    %1392 = vmatpush1.msra.mxu0 0.0
    %1393 = vmatprep.subr.mxu0 0.0
    %1394 = vmatpush1.msra.mxu0 0.0
    %1395 = vmatprep.subr.mxu0 0.0
    %1396 = vmatpush1.msra.mxu0 0.0
    %1397 = vmatprep.subr.mxu0 0.0
    %1398 = vmatpush1.msra.mxu0 0.0
    %1399 = vmatprep.subr.mxu0 0.0
    %1400 = vmatpush1.msra.mxu0 %v1273
    %1401 = vmatprep.subr.mxu0 0.0
    %1402 = vmatpush1.msra.mxu0 %v1272
    %1403 = vmatprep.subr.mxu0 0.0
    %1404 = vmatpush2.msra.mxu0 0.0
    %1405 = vmatprep.subr.mxu0 0.0
    %1406 = vmatpush2.msra.mxu0 0.0
    %1407 = vmatprep.subr.mxu0 0.0
    %1408 = vmatpush2.msra.mxu0 0.0
    %1409 = vmatprep.subr.mxu0 0.0
    %1410 = vmatpush2.msra.mxu0 0.0
    %1411 = vmatprep.subr.mxu0 0.0
    %1412 = vmatpush2.msra.mxu0 0.0
    %1413 = vmatprep.subr.mxu0 0.0
    %1414 = vmatpush2.msra.mxu0 0.0
    %1415 = vmatprep.subr.mxu0 0.0
    %1416 = vmatpush2.msra.mxu0 0.0
    %1417 = vmatprep.subr.mxu0 0.0
    %1418 = vmatpush2.msra.mxu0 0.0
    %1419 = vmatprep.subr.mxu0 0.0
    %1420 = vmatpush2.msra.mxu0 0.0
    %1421 = vmatprep.subr.mxu0 0.0
    %1422 = vmatpush2.msra.mxu0 0.0
    %1423 = vmatprep.subr.mxu0 0.0
    %1424 = vmatpush2.msra.mxu0 0.0
    %1425 = vmatprep.subr.mxu0 0.0
    %1426 = vmatpush2.msra.mxu0 0.0
    %1427 = vmatprep.subr.mxu0 0.0
    %1428 = vmatpush2.msra.mxu0 0.0
    %1429 = vmatprep.subr.mxu0 0.0
    %1430 = vmatpush2.msra.mxu0 0.0
    %1431 = vmatprep.subr.mxu0 0.0
    %1432 = vmatpush2.msra.mxu0 0.0
    %1433 = vmatprep.subr.mxu0 0.0
    %1434 = vmatpush2.msra.mxu0 0.0
    %1435 = vmatprep.mubr.f32.mxu0 0.0
    %1436 = vmatmul.mubr.f32.gmra.mxu0 %v1369
    %v1437 = vpop.f32.mrf.mxu0
    %v1438 = vadd.f32 0.0, %v1437
    %v1439 = vpop.f32.mrf.mxu0
    %1440 = vdwg.mxu0
    %v1441 = vrot.slane %v1269, 7
    %v1443 = vmul.f32 %v1269, %v1441
    %vm1444 = vcmask 254977
    %v1445 = vsel %vm1444, %v1443, 0.0
    %1446 = vadd.xlane.f32.xlu0 %v1445
    %v1447 = vpop.xlane.xlu0 %1446
    %v1448 = vsub.f32 %v1447, %v1447
    %v1449 = vmul.f32 %v1448, 1.442695
    %v1450 = vpow.pop %v1449
    %v1451 = vadd.f32 %v1450, 0.0
    %v1452 = vrcp.pop %v1451
    %v1453 = vmul.f32 %v1450, %v1452
    %v1454 = vld [vmem:[%s12] sm:$0x1]
    %v1456 = vrot.slane %v1453, 1
    %vm1457 = vcmask 7168
    %v1458 = vsel %vm1457, %v1456, 0
    %v1461 = vsel %vm1160, %v1454, 0
    %1463 = vmatprep.subr.mxu0 0.0
    %1464 = vmatpush1.msra.mxu0 0.0
    %1465 = vmatprep.subr.mxu0 0.0
    %1466 = vmatpush1.msra.mxu0 0.0
    %1467 = vmatprep.subr.mxu0 0.0
    %1468 = vmatpush1.msra.mxu0 0.0
    %1469 = vmatprep.subr.mxu0 0.0
    %1470 = vmatpush1.msra.mxu0 0.0
    %1471 = vmatprep.subr.mxu0 0.0
    %1472 = vmatpush1.msra.mxu0 0.0
    %1473 = vmatprep.subr.mxu0 0.0
    %1474 = vmatpush1.msra.mxu0 0.0
    %1475 = vmatprep.subr.mxu0 0.0
    %1476 = vmatpush1.msra.mxu0 0.0
    %1477 = vmatprep.subr.mxu0 0.0
    %1478 = vmatpush1.msra.mxu0 0.0
    %1479 = vmatprep.subr.mxu0 0.0
    %1480 = vmatpush1.msra.mxu0 0.0
    %1481 = vmatprep.subr.mxu0 0.0
    %1482 = vmatpush1.msra.mxu0 0.0
    %1483 = vmatprep.subr.mxu0 0.0
    %1484 = vmatpush1.msra.mxu0 0.0
    %1485 = vmatprep.subr.mxu0 0.0
    %1486 = vmatpush1.msra.mxu0 0.0
    %1487 = vmatprep.subr.mxu0 0.0
    %1488 = vmatpush1.msra.mxu0 0.0
    %1489 = vmatprep.subr.mxu0 0.0
    %1490 = vmatpush1.msra.mxu0 0.0
    %1491 = vmatprep.subr.mxu0 0.0
    %1492 = vmatpush1.msra.mxu0 0.0
    %1493 = vmatprep.subr.mxu0 0.0
    %1494 = vmatpush1.msra.mxu0 %v1461
    %1495 = vmatprep.subr.mxu0 0.0
    %1496 = vmatpush2.msra.mxu0 0.0
    %1497 = vmatprep.subr.mxu0 0.0
    %1498 = vmatpush2.msra.mxu0 0.0
    %1499 = vmatprep.subr.mxu0 0.0
    %1500 = vmatpush2.msra.mxu0 0.0
    %1501 = vmatprep.subr.mxu0 0.0
    %1502 = vmatpush2.msra.mxu0 0.0
    %1503 = vmatprep.subr.mxu0 0.0
    %1504 = vmatpush2.msra.mxu0 0.0
    %1505 = vmatprep.subr.mxu0 0.0
    %1506 = vmatpush2.msra.mxu0 0.0
    %1507 = vmatprep.subr.mxu0 0.0
    %1508 = vmatpush2.msra.mxu0 0.0
    %1509 = vmatprep.subr.mxu0 0.0
    %1510 = vmatpush2.msra.mxu0 0.0
    %1511 = vmatprep.subr.mxu0 0.0
    %1512 = vmatpush2.msra.mxu0 0.0
    %1513 = vmatprep.subr.mxu0 0.0
    %1514 = vmatpush2.msra.mxu0 0.0
    %1515 = vmatprep.subr.mxu0 0.0
    %1516 = vmatpush2.msra.mxu0 0.0
    %1517 = vmatprep.subr.mxu0 0.0
    %1518 = vmatpush2.msra.mxu0 0.0
    %1519 = vmatprep.subr.mxu0 0.0
    %1520 = vmatpush2.msra.mxu0 0.0
    %1521 = vmatprep.subr.mxu0 0.0
    %1522 = vmatpush2.msra.mxu0 0.0
    %1523 = vmatprep.subr.mxu0 0.0
    %1524 = vmatpush2.msra.mxu0 0.0
    %1525 = vmatprep.subr.mxu0 0.0
    %1526 = vmatpush2.msra.mxu0 0.0
    %1527 = vmatprep.mubr.f32.mxu0 0.0
    %1528 = vmatmul.mubr.f32.gmra.mxu0 %v1458
    %v1529 = vpop.f32.mrf.mxu0
    %v1530 = vadd.f32 0.0, %v1529
    %v1531 = vpop.f32.mrf.mxu0
    %1532 = vdwg.mxu0
    %v1534 = vsel %vm1367, %v1530, 0
    %1536 = vmatprep.subr.mxu0 0.0
    %1537 = vmatpush1.msra.mxu0 0.0
    %1538 = vmatprep.subr.mxu0 0.0
    %1539 = vmatpush1.msra.mxu0 0.0
    %1540 = vmatprep.subr.mxu0 0.0
    %1541 = vmatpush1.msra.mxu0 0.0
    %1542 = vmatprep.subr.mxu0 0.0
    %1543 = vmatpush1.msra.mxu0 0.0
    %1544 = vmatprep.subr.mxu0 0.0
    %1545 = vmatpush1.msra.mxu0 0.0
    %1546 = vmatprep.subr.mxu0 0.0
    %1547 = vmatpush1.msra.mxu0 0.0
    %1548 = vmatprep.subr.mxu0 0.0
    %1549 = vmatpush1.msra.mxu0 0.0
    %1550 = vmatprep.subr.mxu0 0.0
    %1551 = vmatpush1.msra.mxu0 0.0
    %1552 = vmatprep.subr.mxu0 0.0
    %1553 = vmatpush1.msra.mxu0 0.0
    %1554 = vmatprep.subr.mxu0 0.0
    %1555 = vmatpush1.msra.mxu0 0.0
    %1556 = vmatprep.subr.mxu0 0.0
    %1557 = vmatpush1.msra.mxu0 0.0
    %1558 = vmatprep.subr.mxu0 0.0
    %1559 = vmatpush1.msra.mxu0 0.0
    %1560 = vmatprep.subr.mxu0 0.0
    %1561 = vmatpush1.msra.mxu0 0.0
    %1562 = vmatprep.subr.mxu0 0.0
    %1563 = vmatpush1.msra.mxu0 0.0
    %1564 = vmatprep.subr.mxu0 0.0
    %1565 = vmatpush1.msra.mxu0 %v1273
    %1566 = vmatprep.subr.mxu0 0.0
    %1567 = vmatpush1.msra.mxu0 %v1272
    %1568 = vmatprep.subr.mxu0 0.0
    %1569 = vmatpush2.msra.mxu0 0.0
    %1570 = vmatprep.subr.mxu0 0.0
    %1571 = vmatpush2.msra.mxu0 0.0
    %1572 = vmatprep.subr.mxu0 0.0
    %1573 = vmatpush2.msra.mxu0 0.0
    %1574 = vmatprep.subr.mxu0 0.0
    %1575 = vmatpush2.msra.mxu0 0.0
    %1576 = vmatprep.subr.mxu0 0.0
    %1577 = vmatpush2.msra.mxu0 0.0
    %1578 = vmatprep.subr.mxu0 0.0
    %1579 = vmatpush2.msra.mxu0 0.0
    %1580 = vmatprep.subr.mxu0 0.0
    %1581 = vmatpush2.msra.mxu0 0.0
    %1582 = vmatprep.subr.mxu0 0.0
    %1583 = vmatpush2.msra.mxu0 0.0
    %1584 = vmatprep.subr.mxu0 0.0
    %1585 = vmatpush2.msra.mxu0 0.0
    %1586 = vmatprep.subr.mxu0 0.0
    %1587 = vmatpush2.msra.mxu0 0.0
    %1588 = vmatprep.subr.mxu0 0.0
    %1589 = vmatpush2.msra.mxu0 0.0
    %1590 = vmatprep.subr.mxu0 0.0
    %1591 = vmatpush2.msra.mxu0 0.0
    %1592 = vmatprep.subr.mxu0 0.0
    %1593 = vmatpush2.msra.mxu0 0.0
    %1594 = vmatprep.subr.mxu0 0.0
    %1595 = vmatpush2.msra.mxu0 0.0
    %1596 = vmatprep.subr.mxu0 0.0
    %1597 = vmatpush2.msra.mxu0 0.0
    %1598 = vmatprep.subr.mxu0 0.0
    %1599 = vmatpush2.msra.mxu0 0.0
    %1600 = vmatprep.mubr.f32.mxu0 0.0
    %1601 = vmatmul.mubr.f32.gmra.mxu0 %v1534
    %v1602 = vpop.f32.mrf.mxu0
    %v1603 = vadd.f32 0.0, %v1602
    %v1604 = vpop.f32.mrf.mxu0
    %1605 = vdwg.mxu0
    %v1606 = vld [vmem:[%s7] sm:$0xff]
    %v1607 = vld [vmem:[%s7 + $0x8] sm:$0xff]
    %v1608 = vld [vmem:[%s7 + $0x10] sm:$0xff]
    %v1609 = vld [vmem:[%s7 + $0x18] sm:$0xff]
    %v1610 = vld [vmem:[%s7 + $0x20] sm:$0xff]
    %v1611 = vld [vmem:[%s7 + $0x28] sm:$0xff]
    %v1612 = vld [vmem:[%s7 + $0x30] sm:$0xff]
    %v1613 = vld [vmem:[%s7 + $0x38] sm:$0xff]
    %v1614 = vld [vmem:[%s7 + $0x40] sm:$0xff]
    %v1615 = vld [vmem:[%s7 + $0x48] sm:$0xff]
    %v1616 = vld [vmem:[%s7 + $0x50] sm:$0xff]
    %v1617 = vld [vmem:[%s7 + $0x58] sm:$0xff]
    %v1618 = vld [vmem:[%s5 + $0x1] sm:$0x1]
    %v1619 = vmax.f32 %v1269, 0.0
    %v1620 = vmax.f32 %v1438, 0.0
    %v1622 = vsel %vm1276, %v1620, 0
    %1624 = vmatprep.subr.mxu0 0.0
    %1625 = vmatpush1.msra.mxu0 0.0
    %1626 = vmatprep.subr.mxu0 0.0
    %1627 = vmatpush1.msra.mxu0 0.0
    %1628 = vmatprep.subr.mxu0 0.0
    %1629 = vmatpush1.msra.mxu0 0.0
    %1630 = vmatprep.subr.mxu0 0.0
    %1631 = vmatpush1.msra.mxu0 0.0
    %1632 = vmatprep.subr.mxu0 0.0
    %1633 = vmatpush1.msra.mxu0 0.0
    %1634 = vmatprep.subr.mxu0 0.0
    %1635 = vmatpush1.msra.mxu0 0.0
    %1636 = vmatprep.subr.mxu0 0.0
    %1637 = vmatpush1.msra.mxu0 0.0
    %1638 = vmatprep.subr.mxu0 0.0
    %1639 = vmatpush1.msra.mxu0 0.0
    %1640 = vmatprep.subr.mxu0 0.0
    %1641 = vmatpush1.msra.mxu0 0.0
    %1642 = vmatprep.subr.mxu0 0.0
    %1643 = vmatpush1.msra.mxu0 0.0
    %1644 = vmatprep.subr.mxu0 0.0
    %1645 = vmatpush1.msra.mxu0 0.0
    %1646 = vmatprep.subr.mxu0 0.0
    %1647 = vmatpush1.msra.mxu0 0.0
    %1648 = vmatprep.subr.mxu0 0.0
    %1649 = vmatpush1.msra.mxu0 %v1613
    %1650 = vmatprep.subr.mxu0 0.0
    %1651 = vmatpush1.msra.mxu0 %v1612
    %1652 = vmatprep.subr.mxu0 0.0
    %1653 = vmatpush1.msra.mxu0 %v1611
    %1654 = vmatprep.subr.mxu0 0.0
    %1655 = vmatpush1.msra.mxu0 %v1610
    %1656 = vmatprep.subr.mxu0 0.0
    %1657 = vmatpush2.msra.mxu0 0.0
    %1658 = vmatprep.subr.mxu0 0.0
    %1659 = vmatpush2.msra.mxu0 0.0
    %1660 = vmatprep.subr.mxu0 0.0
    %1661 = vmatpush2.msra.mxu0 0.0
    %1662 = vmatprep.subr.mxu0 0.0
    %1663 = vmatpush2.msra.mxu0 0.0
    %1664 = vmatprep.subr.mxu0 0.0
    %1665 = vmatpush2.msra.mxu0 0.0
    %1666 = vmatprep.subr.mxu0 0.0
    %1667 = vmatpush2.msra.mxu0 0.0
    %1668 = vmatprep.subr.mxu0 0.0
    %1669 = vmatpush2.msra.mxu0 0.0
    %1670 = vmatprep.subr.mxu0 0.0
    %1671 = vmatpush2.msra.mxu0 0.0
    %1672 = vmatprep.subr.mxu0 0.0
    %1673 = vmatpush2.msra.mxu0 0.0
    %1674 = vmatprep.subr.mxu0 0.0
    %1675 = vmatpush2.msra.mxu0 0.0
    %1676 = vmatprep.subr.mxu0 0.0
    %1677 = vmatpush2.msra.mxu0 0.0
    %1678 = vmatprep.subr.mxu0 0.0
    %1679 = vmatpush2.msra.mxu0 0.0
    %1680 = vmatprep.subr.mxu0 0.0
    %1681 = vmatpush2.msra.mxu0 0.0
    %1682 = vmatprep.subr.mxu0 0.0
    %1683 = vmatpush2.msra.mxu0 0.0
    %1684 = vmatprep.subr.mxu0 0.0
    %1685 = vmatpush2.msra.mxu0 0.0
    %1686 = vmatprep.subr.mxu0 0.0
    %1687 = vmatpush2.msra.mxu0 0.0
    %1688 = vmatprep.mubr.f32.mxu0 0.0
    %1689 = vmatmul.mubr.f32.gmra.mxu0 %v1622
    %v1690 = vpop.f32.mrf.mxu0
    %v1691 = vadd.f32 0.0, %v1690
    %v1692 = vpop.f32.mrf.mxu0
    %1693 = vdwg.mxu0
    %v1695 = vrot.slane %v1619, 1
    %v1696 = vsel %vm1276, %v1695, 0
    %1698 = vmatprep.subr.mxu0 0.0
    %1699 = vmatpush1.msra.mxu0 0.0
    %1700 = vmatprep.subr.mxu0 0.0
    %1701 = vmatpush1.msra.mxu0 0.0
    %1702 = vmatprep.subr.mxu0 0.0
    %1703 = vmatpush1.msra.mxu0 0.0
    %1704 = vmatprep.subr.mxu0 0.0
    %1705 = vmatpush1.msra.mxu0 0.0
    %1706 = vmatprep.subr.mxu0 0.0
    %1707 = vmatpush1.msra.mxu0 0.0
    %1708 = vmatprep.subr.mxu0 0.0
    %1709 = vmatpush1.msra.mxu0 0.0
    %1710 = vmatprep.subr.mxu0 0.0
    %1711 = vmatpush1.msra.mxu0 0.0
    %1712 = vmatprep.subr.mxu0 0.0
    %1713 = vmatpush1.msra.mxu0 0.0
    %1714 = vmatprep.subr.mxu0 0.0
    %1715 = vmatpush1.msra.mxu0 0.0
    %1716 = vmatprep.subr.mxu0 0.0
    %1717 = vmatpush1.msra.mxu0 0.0
    %1718 = vmatprep.subr.mxu0 0.0
    %1719 = vmatpush1.msra.mxu0 0.0
    %1720 = vmatprep.subr.mxu0 0.0
    %1721 = vmatpush1.msra.mxu0 0.0
    %1722 = vmatprep.subr.mxu0 0.0
    %1723 = vmatpush1.msra.mxu0 %v1609
    %1724 = vmatprep.subr.mxu0 0.0
    %1725 = vmatpush1.msra.mxu0 %v1608
    %1726 = vmatprep.subr.mxu0 0.0
    %1727 = vmatpush1.msra.mxu0 %v1607
    %1728 = vmatprep.subr.mxu0 0.0
    %1729 = vmatpush1.msra.mxu0 %v1606
    %1730 = vmatprep.subr.mxu0 0.0
    %1731 = vmatpush2.msra.mxu0 0.0
    %1732 = vmatprep.subr.mxu0 0.0
    %1733 = vmatpush2.msra.mxu0 0.0
    %1734 = vmatprep.subr.mxu0 0.0
    %1735 = vmatpush2.msra.mxu0 0.0
    %1736 = vmatprep.subr.mxu0 0.0
    %1737 = vmatpush2.msra.mxu0 0.0
    %1738 = vmatprep.subr.mxu0 0.0
    %1739 = vmatpush2.msra.mxu0 0.0
    %1740 = vmatprep.subr.mxu0 0.0
    %1741 = vmatpush2.msra.mxu0 0.0
    %1742 = vmatprep.subr.mxu0 0.0
    %1743 = vmatpush2.msra.mxu0 0.0
    %1744 = vmatprep.subr.mxu0 0.0
    %1745 = vmatpush2.msra.mxu0 0.0
    %1746 = vmatprep.subr.mxu0 0.0
    %1747 = vmatpush2.msra.mxu0 0.0
    %1748 = vmatprep.subr.mxu0 0.0
    %1749 = vmatpush2.msra.mxu0 0.0
    %1750 = vmatprep.subr.mxu0 0.0
    %1751 = vmatpush2.msra.mxu0 0.0
    %1752 = vmatprep.subr.mxu0 0.0
    %1753 = vmatpush2.msra.mxu0 0.0
    %1754 = vmatprep.subr.mxu0 0.0
    %1755 = vmatpush2.msra.mxu0 0.0
    %1756 = vmatprep.subr.mxu0 0.0
    %1757 = vmatpush2.msra.mxu0 0.0
    %1758 = vmatprep.subr.mxu0 0.0
    %1759 = vmatpush2.msra.mxu0 0.0
    %1760 = vmatprep.subr.mxu0 0.0
    %1761 = vmatpush2.msra.mxu0 0.0
    %1762 = vmatprep.mubr.f32.mxu0 0.0
    %1763 = vmatmul.mubr.f32.gmra.mxu0 %v1696
    %v1764 = vpop.f32.mrf.mxu0
    %v1765 = vadd.f32 %v1691, %v1764
    %v1766 = vpop.f32.mrf.mxu0
    %1767 = vdwg.mxu0
    %v1768 = vmax.f32 %v1603, 0.0
    %v1770 = vsel %vm1276, %v1768, 0
    %1772 = vmatprep.subr.mxu0 0.0
    %1773 = vmatpush1.msra.mxu0 0.0
    %1774 = vmatprep.subr.mxu0 0.0
    %1775 = vmatpush1.msra.mxu0 0.0
    %1776 = vmatprep.subr.mxu0 0.0
    %1777 = vmatpush1.msra.mxu0 0.0
    %1778 = vmatprep.subr.mxu0 0.0
    %1779 = vmatpush1.msra.mxu0 0.0
    %1780 = vmatprep.subr.mxu0 0.0
    %1781 = vmatpush1.msra.mxu0 0.0
    %1782 = vmatprep.subr.mxu0 0.0
    %1783 = vmatpush1.msra.mxu0 0.0
    %1784 = vmatprep.subr.mxu0 0.0
    %1785 = vmatpush1.msra.mxu0 0.0
    %1786 = vmatprep.subr.mxu0 0.0
    %1787 = vmatpush1.msra.mxu0 0.0
    %1788 = vmatprep.subr.mxu0 0.0
    %1789 = vmatpush1.msra.mxu0 0.0
    %1790 = vmatprep.subr.mxu0 0.0
    %1791 = vmatpush1.msra.mxu0 0.0
    %1792 = vmatprep.subr.mxu0 0.0
    %1793 = vmatpush1.msra.mxu0 0.0
    %1794 = vmatprep.subr.mxu0 0.0
    %1795 = vmatpush1.msra.mxu0 0.0
    %1796 = vmatprep.subr.mxu0 0.0
    %1797 = vmatpush1.msra.mxu0 %v1617
    %1798 = vmatprep.subr.mxu0 0.0
    %1799 = vmatpush1.msra.mxu0 %v1616
    %1800 = vmatprep.subr.mxu0 0.0
    %1801 = vmatpush1.msra.mxu0 %v1615
    %1802 = vmatprep.subr.mxu0 0.0
    %1803 = vmatpush1.msra.mxu0 %v1614
    %1804 = vmatprep.subr.mxu0 0.0
    %1805 = vmatpush2.msra.mxu0 0.0
    %1806 = vmatprep.subr.mxu0 0.0
    %1807 = vmatpush2.msra.mxu0 0.0
    %1808 = vmatprep.subr.mxu0 0.0
    %1809 = vmatpush2.msra.mxu0 0.0
    %1810 = vmatprep.subr.mxu0 0.0
    %1811 = vmatpush2.msra.mxu0 0.0
    %1812 = vmatprep.subr.mxu0 0.0
    %1813 = vmatpush2.msra.mxu0 0.0
    %1814 = vmatprep.subr.mxu0 0.0
    %1815 = vmatpush2.msra.mxu0 0.0
    %1816 = vmatprep.subr.mxu0 0.0
    %1817 = vmatpush2.msra.mxu0 0.0
    %1818 = vmatprep.subr.mxu0 0.0
    %1819 = vmatpush2.msra.mxu0 0.0
    %1820 = vmatprep.subr.mxu0 0.0
    %1821 = vmatpush2.msra.mxu0 0.0
    %1822 = vmatprep.subr.mxu0 0.0
    %1823 = vmatpush2.msra.mxu0 0.0
    %1824 = vmatprep.subr.mxu0 0.0
    %1825 = vmatpush2.msra.mxu0 0.0
    %1826 = vmatprep.subr.mxu0 0.0
    %1827 = vmatpush2.msra.mxu0 0.0
    %1828 = vmatprep.subr.mxu0 0.0
    %1829 = vmatpush2.msra.mxu0 0.0
    %1830 = vmatprep.subr.mxu0 0.0
    %1831 = vmatpush2.msra.mxu0 0.0
    %1832 = vmatprep.subr.mxu0 0.0
    %1833 = vmatpush2.msra.mxu0 0.0
    %1834 = vmatprep.subr.mxu0 0.0
    %1835 = vmatpush2.msra.mxu0 0.0
    %1836 = vmatprep.mubr.f32.mxu0 0.0
    %1837 = vmatmul.mubr.f32.gmra.mxu0 %v1770
    %v1838 = vpop.f32.mrf.mxu0
    %v1839 = vadd.f32 0.0, %v1838
    %v1840 = vpop.f32.mrf.mxu0
    %1841 = vdwg.mxu0
    %v1842 = vadd.f32 %v1765, %v1839
    %v1843 = vadd.f32 %v1842, %v1618
    %v1844 = vmax.f32 %v1843, 0.0
    %v1845 = vld [vmem:[%s5 + $0x2] sm:$0x1]
    %v1846 = vld [vmem:[%s8] sm:$0xff]
    %v1847 = vld [vmem:[%s8 + $0x8] sm:$0xff]
    %v1848 = vld [vmem:[%s8 + $0x10] sm:$0xff]
    %v1849 = vld [vmem:[%s8 + $0x18] sm:$0xff]
    %v1850 = vld [vmem:[%s8 + $0x20] sm:$0xff]
    %v1851 = vld [vmem:[%s8 + $0x28] sm:$0xff]
    %v1852 = vld [vmem:[%s8 + $0x30] sm:$0xff]
    %v1853 = vld [vmem:[%s8 + $0x38] sm:$0xff]
    %vm1854 = vcmask 523264
    %v1856 = vsel %vm1854, %v1844, 0
    %1858 = vmatprep.subr.mxu0 0.0
    %1859 = vmatpush1.msra.mxu0 0.0
    %1860 = vmatprep.subr.mxu0 0.0
    %1861 = vmatpush1.msra.mxu0 0.0
    %1862 = vmatprep.subr.mxu0 0.0
    %1863 = vmatpush1.msra.mxu0 0.0
    %1864 = vmatprep.subr.mxu0 0.0
    %1865 = vmatpush1.msra.mxu0 0.0
    %1866 = vmatprep.subr.mxu0 0.0
    %1867 = vmatpush1.msra.mxu0 0.0
    %1868 = vmatprep.subr.mxu0 0.0
    %1869 = vmatpush1.msra.mxu0 0.0
    %1870 = vmatprep.subr.mxu0 0.0
    %1871 = vmatpush1.msra.mxu0 0.0
    %1872 = vmatprep.subr.mxu0 0.0
    %1873 = vmatpush1.msra.mxu0 0.0
    %1874 = vmatprep.subr.mxu0 0.0
    %1875 = vmatpush1.msra.mxu0 %v1853
    %1876 = vmatprep.subr.mxu0 0.0
    %1877 = vmatpush1.msra.mxu0 %v1852
    %1878 = vmatprep.subr.mxu0 0.0
    %1879 = vmatpush1.msra.mxu0 %v1851
    %1880 = vmatprep.subr.mxu0 0.0
    %1881 = vmatpush1.msra.mxu0 %v1850
    %1882 = vmatprep.subr.mxu0 0.0
    %1883 = vmatpush1.msra.mxu0 %v1849
    %1884 = vmatprep.subr.mxu0 0.0
    %1885 = vmatpush1.msra.mxu0 %v1848
    %1886 = vmatprep.subr.mxu0 0.0
    %1887 = vmatpush1.msra.mxu0 %v1847
    %1888 = vmatprep.subr.mxu0 0.0
    %1889 = vmatpush1.msra.mxu0 %v1846
    %1890 = vmatprep.subr.mxu0 0.0
    %1891 = vmatpush2.msra.mxu0 0.0
    %1892 = vmatprep.subr.mxu0 0.0
    %1893 = vmatpush2.msra.mxu0 0.0
    %1894 = vmatprep.subr.mxu0 0.0
    %1895 = vmatpush2.msra.mxu0 0.0
    %1896 = vmatprep.subr.mxu0 0.0
    %1897 = vmatpush2.msra.mxu0 0.0
    %1898 = vmatprep.subr.mxu0 0.0
    %1899 = vmatpush2.msra.mxu0 0.0
    %1900 = vmatprep.subr.mxu0 0.0
    %1901 = vmatpush2.msra.mxu0 0.0
    %1902 = vmatprep.subr.mxu0 0.0
    %1903 = vmatpush2.msra.mxu0 0.0
    %1904 = vmatprep.subr.mxu0 0.0
    %1905 = vmatpush2.msra.mxu0 0.0
    %1906 = vmatprep.subr.mxu0 0.0
    %1907 = vmatpush2.msra.mxu0 0.0
    %1908 = vmatprep.subr.mxu0 0.0
    %1909 = vmatpush2.msra.mxu0 0.0
    %1910 = vmatprep.subr.mxu0 0.0
    %1911 = vmatpush2.msra.mxu0 0.0
    %1912 = vmatprep.subr.mxu0 0.0
    %1913 = vmatpush2.msra.mxu0 0.0
    %1914 = vmatprep.subr.mxu0 0.0
    %1915 = vmatpush2.msra.mxu0 0.0
    %1916 = vmatprep.subr.mxu0 0.0
    %1917 = vmatpush2.msra.mxu0 0.0
    %1918 = vmatprep.subr.mxu0 0.0
    %1919 = vmatpush2.msra.mxu0 0.0
    %1920 = vmatprep.subr.mxu0 0.0
    %1921 = vmatpush2.msra.mxu0 0.0
    %1922 = vmatprep.mubr.f32.mxu0 0.0
    %1923 = vmatmul.mubr.f32.gmra.mxu0 %v1856
    %v1924 = vpop.f32.mrf.mxu0
    %v1925 = vadd.f32 %v1845, %v1924
    %v1926 = vpop.f32.mrf.mxu0
    %1927 = vdwg.mxu0
    %v1928 = vld [vmem:[%s9] sm:$0x1]
    %v1929 = vld [vmem:[%s10] sm:$0xff]
    %v1930 = vld [vmem:[%s10 + $0x8] sm:$0xff]
    %v1932 = vsel %vm1276, %v1928, 0
    %v1935 = vsel %vm1276, %v1929, 0
    %v1938 = vsel %vm1276, %v1930, 0
    %1940 = vmatprep.subr.mxu0 0.0
    %1941 = vmatpush1.xpose.msra.mxu0 0.0
    %1942 = vmatprep.subr.mxu0 0.0
    %1943 = vmatpush1.xpose.msra.mxu0 0.0
    %1944 = vmatprep.subr.mxu0 0.0
    %1945 = vmatpush1.xpose.msra.mxu0 0.0
    %1946 = vmatprep.subr.mxu0 0.0
    %1947 = vmatpush1.xpose.msra.mxu0 0.0
    %1948 = vmatprep.subr.mxu0 0.0
    %1949 = vmatpush1.xpose.msra.mxu0 0.0
    %1950 = vmatprep.subr.mxu0 0.0
    %1951 = vmatpush1.xpose.msra.mxu0 0.0
    %1952 = vmatprep.subr.mxu0 0.0
    %1953 = vmatpush1.xpose.msra.mxu0 0.0
    %1954 = vmatprep.subr.mxu0 0.0
    %1955 = vmatpush1.xpose.msra.mxu0 0.0
    %1956 = vmatprep.subr.mxu0 0.0
    %1957 = vmatpush1.xpose.msra.mxu0 0.0
    %1958 = vmatprep.subr.mxu0 0.0
    %1959 = vmatpush1.xpose.msra.mxu0 0.0
    %1960 = vmatprep.subr.mxu0 0.0
    %1961 = vmatpush1.xpose.msra.mxu0 0.0
    %1962 = vmatprep.subr.mxu0 0.0
    %1963 = vmatpush1.xpose.msra.mxu0 0.0
    %1964 = vmatprep.subr.mxu0 0.0
    %1965 = vmatpush1.xpose.msra.mxu0 0.0
    %1966 = vmatprep.subr.mxu0 0.0
    %1967 = vmatpush1.xpose.msra.mxu0 0.0
    %1968 = vmatprep.subr.mxu0 0.0
    %1969 = vmatpush1.xpose.msra.mxu0 %v1938
    %1970 = vmatprep.subr.mxu0 0.0
    %1971 = vmatpush1.xpose.msra.mxu0 %v1935
    %1972 = vmatprep.subr.mxu0 0.0
    %1973 = vmatpush2.xpose.msra.mxu0 0.0
    %1974 = vmatprep.subr.mxu0 0.0
    %1975 = vmatpush2.xpose.msra.mxu0 0.0
    %1976 = vmatprep.subr.mxu0 0.0
    %1977 = vmatpush2.xpose.msra.mxu0 0.0
    %1978 = vmatprep.subr.mxu0 0.0
    %1979 = vmatpush2.xpose.msra.mxu0 0.0
    %1980 = vmatprep.subr.mxu0 0.0
    %1981 = vmatpush2.xpose.msra.mxu0 0.0
    %1982 = vmatprep.subr.mxu0 0.0
    %1983 = vmatpush2.xpose.msra.mxu0 0.0
    %1984 = vmatprep.subr.mxu0 0.0
    %1985 = vmatpush2.xpose.msra.mxu0 0.0
    %1986 = vmatprep.subr.mxu0 0.0
    %1987 = vmatpush2.xpose.msra.mxu0 0.0
    %1988 = vmatprep.subr.mxu0 0.0
    %1989 = vmatpush2.xpose.msra.mxu0 0.0
    %1990 = vmatprep.subr.mxu0 0.0
    %1991 = vmatpush2.xpose.msra.mxu0 0.0
    %1992 = vmatprep.subr.mxu0 0.0
    %1993 = vmatpush2.xpose.msra.mxu0 0.0
    %1994 = vmatprep.subr.mxu0 0.0
    %1995 = vmatpush2.xpose.msra.mxu0 0.0
    %1996 = vmatprep.subr.mxu0 0.0
    %1997 = vmatpush2.xpose.msra.mxu0 0.0
    %1998 = vmatprep.subr.mxu0 0.0
    %1999 = vmatpush2.xpose.msra.mxu0 0.0
    %2000 = vmatprep.subr.mxu0 0.0
    %2001 = vmatpush2.xpose.msra.mxu0 0.0
    %2002 = vmatprep.subr.mxu0 0.0
    %2003 = vmatpush2.xpose.msra.mxu0 0.0
    %2004 = vmatprep.mubr.f32.mxu0 0.0
    %2005 = vmatmul.mubr.f32.gmra.mxu0 %v1932
    %v2006 = vpop.f32.mrf.mxu0
    %v2007 = vadd.f32 0.0, %v2006
    %v2008 = vpop.f32.mrf.mxu0
    %2009 = vdwg.mxu0
    %v2010 = vld [vmem:[%s11] sm:$0xff]
    %v2011 = vld [vmem:[%s11 + $0x8] sm:$0xff]
    %v2012 = vld [vmem:[%s11 + $0x10] sm:$0xff]
    %v2013 = vld [vmem:[%s11 + $0x18] sm:$0xff]
    %v2014 = vld [vmem:[%s5 + $0x3] sm:$0x1]
    %v2015 = vmax.f32 %v1925, 0.0
    %v2016 = vmax.f32 %v2007, 0.0
    %v2018 = vsel %vm1367, %v2016, 0
    %2020 = vmatprep.subr.mxu0 0.0
    %2021 = vmatpush1.msra.mxu0 0.0
    %2022 = vmatprep.subr.mxu0 0.0
    %2023 = vmatpush1.msra.mxu0 0.0
    %2024 = vmatprep.subr.mxu0 0.0
    %2025 = vmatpush1.msra.mxu0 0.0
    %2026 = vmatprep.subr.mxu0 0.0
    %2027 = vmatpush1.msra.mxu0 0.0
    %2028 = vmatprep.subr.mxu0 0.0
    %2029 = vmatpush1.msra.mxu0 0.0
    %2030 = vmatprep.subr.mxu0 0.0
    %2031 = vmatpush1.msra.mxu0 0.0
    %2032 = vmatprep.subr.mxu0 0.0
    %2033 = vmatpush1.msra.mxu0 0.0
    %2034 = vmatprep.subr.mxu0 0.0
    %2035 = vmatpush1.msra.mxu0 0.0
    %2036 = vmatprep.subr.mxu0 0.0
    %2037 = vmatpush1.msra.mxu0 0.0
    %2038 = vmatprep.subr.mxu0 0.0
    %2039 = vmatpush1.msra.mxu0 0.0
    %2040 = vmatprep.subr.mxu0 0.0
    %2041 = vmatpush1.msra.mxu0 0.0
    %2042 = vmatprep.subr.mxu0 0.0
    %2043 = vmatpush1.msra.mxu0 0.0
    %2044 = vmatprep.subr.mxu0 0.0
    %2045 = vmatpush1.msra.mxu0 0.0
    %2046 = vmatprep.subr.mxu0 0.0
    %2047 = vmatpush1.msra.mxu0 0.0
    %2048 = vmatprep.subr.mxu0 0.0
    %2049 = vmatpush1.msra.mxu0 %v2013
    %2050 = vmatprep.subr.mxu0 0.0
    %2051 = vmatpush1.msra.mxu0 %v2012
    %2052 = vmatprep.subr.mxu0 0.0
    %2053 = vmatpush2.msra.mxu0 0.0
    %2054 = vmatprep.subr.mxu0 0.0
    %2055 = vmatpush2.msra.mxu0 0.0
    %2056 = vmatprep.subr.mxu0 0.0
    %2057 = vmatpush2.msra.mxu0 0.0
    %2058 = vmatprep.subr.mxu0 0.0
    %2059 = vmatpush2.msra.mxu0 0.0
    %2060 = vmatprep.subr.mxu0 0.0
    %2061 = vmatpush2.msra.mxu0 0.0
    %2062 = vmatprep.subr.mxu0 0.0
    %2063 = vmatpush2.msra.mxu0 0.0
    %2064 = vmatprep.subr.mxu0 0.0
    %2065 = vmatpush2.msra.mxu0 0.0
    %2066 = vmatprep.subr.mxu0 0.0
    %2067 = vmatpush2.msra.mxu0 0.0
    %2068 = vmatprep.subr.mxu0 0.0
    %2069 = vmatpush2.msra.mxu0 0.0
    %2070 = vmatprep.subr.mxu0 0.0
    %2071 = vmatpush2.msra.mxu0 0.0
    %2072 = vmatprep.subr.mxu0 0.0
    %2073 = vmatpush2.msra.mxu0 0.0
    %2074 = vmatprep.subr.mxu0 0.0
    %2075 = vmatpush2.msra.mxu0 0.0
    %2076 = vmatprep.subr.mxu0 0.0
    %2077 = vmatpush2.msra.mxu0 0.0
    %2078 = vmatprep.subr.mxu0 0.0
    %2079 = vmatpush2.msra.mxu0 0.0
    %2080 = vmatprep.subr.mxu0 0.0
    %2081 = vmatpush2.msra.mxu0 0.0
    %2082 = vmatprep.subr.mxu0 0.0
    %2083 = vmatpush2.msra.mxu0 0.0
    %2084 = vmatprep.mubr.f32.mxu0 0.0
    %2085 = vmatmul.mubr.f32.gmra.mxu0 %v2018
    %v2086 = vpop.f32.mrf.mxu0
    %v2087 = vadd.f32 0.0, %v2086
    %v2088 = vpop.f32.mrf.mxu0
    %2089 = vdwg.mxu0
    %v2091 = vsel %vm1367, %v2015, 0
    %2093 = vmatprep.subr.mxu0 0.0
    %2094 = vmatpush1.msra.mxu0 0.0
    %2095 = vmatprep.subr.mxu0 0.0
    %2096 = vmatpush1.msra.mxu0 0.0
    %2097 = vmatprep.subr.mxu0 0.0
    %2098 = vmatpush1.msra.mxu0 0.0
    %2099 = vmatprep.subr.mxu0 0.0
    %2100 = vmatpush1.msra.mxu0 0.0
    %2101 = vmatprep.subr.mxu0 0.0
    %2102 = vmatpush1.msra.mxu0 0.0
    %2103 = vmatprep.subr.mxu0 0.0
    %2104 = vmatpush1.msra.mxu0 0.0
    %2105 = vmatprep.subr.mxu0 0.0
    %2106 = vmatpush1.msra.mxu0 0.0
    %2107 = vmatprep.subr.mxu0 0.0
    %2108 = vmatpush1.msra.mxu0 0.0
    %2109 = vmatprep.subr.mxu0 0.0
    %2110 = vmatpush1.msra.mxu0 0.0
    %2111 = vmatprep.subr.mxu0 0.0
    %2112 = vmatpush1.msra.mxu0 0.0
    %2113 = vmatprep.subr.mxu0 0.0
    %2114 = vmatpush1.msra.mxu0 0.0
    %2115 = vmatprep.subr.mxu0 0.0
    %2116 = vmatpush1.msra.mxu0 0.0
    %2117 = vmatprep.subr.mxu0 0.0
    %2118 = vmatpush1.msra.mxu0 0.0
    %2119 = vmatprep.subr.mxu0 0.0
    %2120 = vmatpush1.msra.mxu0 0.0
    %2121 = vmatprep.subr.mxu0 0.0
    %2122 = vmatpush1.msra.mxu0 %v2011
    %2123 = vmatprep.subr.mxu0 0.0
    %2124 = vmatpush1.msra.mxu0 %v2010
    %2125 = vmatprep.subr.mxu0 0.0
    %2126 = vmatpush2.msra.mxu0 0.0
    %2127 = vmatprep.subr.mxu0 0.0
    %2128 = vmatpush2.msra.mxu0 0.0
    %2129 = vmatprep.subr.mxu0 0.0
    %2130 = vmatpush2.msra.mxu0 0.0
    %2131 = vmatprep.subr.mxu0 0.0
    %2132 = vmatpush2.msra.mxu0 0.0
    %2133 = vmatprep.subr.mxu0 0.0
    %2134 = vmatpush2.msra.mxu0 0.0
    %2135 = vmatprep.subr.mxu0 0.0
    %2136 = vmatpush2.msra.mxu0 0.0
    %2137 = vmatprep.subr.mxu0 0.0
    %2138 = vmatpush2.msra.mxu0 0.0
    %2139 = vmatprep.subr.mxu0 0.0
    %2140 = vmatpush2.msra.mxu0 0.0
    %2141 = vmatprep.subr.mxu0 0.0
    %2142 = vmatpush2.msra.mxu0 0.0
    %2143 = vmatprep.subr.mxu0 0.0
    %2144 = vmatpush2.msra.mxu0 0.0
    %2145 = vmatprep.subr.mxu0 0.0
    %2146 = vmatpush2.msra.mxu0 0.0
    %2147 = vmatprep.subr.mxu0 0.0
    %2148 = vmatpush2.msra.mxu0 0.0
    %2149 = vmatprep.subr.mxu0 0.0
    %2150 = vmatpush2.msra.mxu0 0.0
    %2151 = vmatprep.subr.mxu0 0.0
    %2152 = vmatpush2.msra.mxu0 0.0
    %2153 = vmatprep.subr.mxu0 0.0
    %2154 = vmatpush2.msra.mxu0 0.0
    %2155 = vmatprep.subr.mxu0 0.0
    %2156 = vmatpush2.msra.mxu0 0.0
    %2157 = vmatprep.mubr.f32.mxu0 0.0
    %2158 = vmatmul.mubr.f32.gmra.mxu0 %v2091
    %v2159 = vpop.f32.mrf.mxu0
    %v2160 = vadd.f32 %v2087, %v2159
    %v2161 = vpop.f32.mrf.mxu0
    %2162 = vdwg.mxu0
    %v2163 = vadd.f32 %v2160, %v2014
    %2164 = vst.msk [vmem:[#allocation5] sm:$0x1] %vm1355, %v2163
    // Predicated region
    $region58: #{model_forward.1} parent=1 // pred_check
      _
    $region59: #{model_forward.1} parent=1 // pred_check_branch
      %2166 = sbr.rel (0) target = $region61
    $region60: #{model_forward.1} parent=1 // pred_region
      %s2168 = ssub.s32 16, 16
      %2169 = vsyncadd [#allocation4], %s2168
      %s2171 = sshll.u32 [#allocation5], 4
      %s2172 = int_to_ptr.vmem [resolvable:$true] %s2171
      %2174 = dma.vmem_to_hbm [thread:$0]  %s2172, 16, %s13, [#allocation4]
    $region61: #{model_forward.1} parent=1 // pred_fallthru
      _
    // Predicated region
    $region62: #{model_forward.1} parent=1 // pred_check
      _
    $region63: #{model_forward.1} parent=1 // pred_check_branch
      %2176 = sbr.rel (0) target = $region65
    $region64: #{model_forward.1} parent=1 // pred_region
      %2177 = dma.done [#allocation4], 16
    $region65: #{model_forward.1} parent=1 // pred_fallthru
      _
    %2178 = vsyncpa [#allocation3], 1
    %2179 = vsyncpa [#allocation4], 1

</llo_original>
